<compile_context>
chip_gen: v5e
topology: v5e:2x2
jax: 0.10.0
libtpu: 0.0.40
codegen_flags: <defaults>
</compile_context>

<pallas_src>
import jax
import jax.numpy as jnp
from jax.experimental import pallas as pl
from jax.experimental.pallas import tpu as pltpu

LANE = 128
SUBLANE = 8


def gcn_kernel(a_ref, x_ref, p_ref,
               w1_ref, t1_ref, w2_ref, t2_ref, w3_ref, t3_ref,
               wl1_ref, bl1_ref, wl2_ref, bl2_ref,
               out_ref):
    a = a_ref[...]                                  # [Np, Np] bf16 weighted adjacency

    def conv_bn_relu(h_bf16, w_ref, t_ref):
        # Neighborhood aggregation on the MXU (bf16 in, f32 accumulate).
        agg = jnp.dot(a, h_bf16, preferred_element_type=jnp.float32)       # [Np, C]
        # Single fused GEMM:  [agg | h] @ [Wrel*s ; Wroot*s]   (K = 2*C, lane-dense)
        z = jnp.concatenate([agg.astype(jnp.bfloat16), h_bf16], axis=-1)   # [Np, 2C]
        out = (jnp.dot(z, w_ref[...], preferred_element_type=jnp.float32)
               + t_ref[...])                        # folded  b_rel*s + (beta - mean*s)
        return jnp.maximum(out, 0.0)                # f32

    h = conv_bn_relu(x_ref[...], w1_ref, t1_ref)                  # [Np, Hp] f32
    h = conv_bn_relu(h.astype(jnp.bfloat16), w2_ref, t2_ref)
    h = conv_bn_relu(h.astype(jnp.bfloat16), w3_ref, t3_ref)

    # global_mean_pool as dense matmul (tiny; keep f32 for exact means).
    pooled = jnp.dot(p_ref[...], h, preferred_element_type=jnp.float32)    # [Bp, Hp]

    # dropout: eval mode -> identity
    z = jnp.maximum(
        jnp.dot(pooled, wl1_ref[...], preferred_element_type=jnp.float32) + bl1_ref[...],
        0.0)                                                               # [Bp, 128]
    y = jnp.dot(z, wl2_ref[...], preferred_element_type=jnp.float32) + bl2_ref[...]
    out_ref[...] = jax.nn.sigmoid(y)                                       # [Bp, 128]


def _rup(v, m):
    return -(-v // m) * m


def _pad2(arr, rows, cols):
    return jnp.pad(arr, ((0, rows - arr.shape[0]), (0, cols - arr.shape[1])))


def model2_forward(x, edge_index, edge_attr, batch, num_graphs, params):
    """Glue: build dense A / pooling P, fold BN into weights, pad lane-dense, one fused call."""
    n, f = x.shape
    hid = params["conv1"]["w_rel"].shape[1]

    n_pad = _rup(n, LANE)
    f_pad = _rup(f, LANE)
    h_pad = _rup(hid, LANE)
    m_pad = _rup(16, LANE)
    o_pad = LANE
    b_pad = _rup(max(num_graphs, SUBLANE), SUBLANE)

    src, dst = edge_index[0], edge_index[1]
    # A[i, j] = sum of edge weights for edges j -> i  (PyG source_to_target flow)
    adj = (jnp.zeros((n_pad, n_pad), jnp.float32)
           .at[dst, src].add(edge_attr.astype(jnp.float32))).astype(jnp.bfloat16)

    x_p = _pad2(x.astype(jnp.float32), n_pad, f_pad).astype(jnp.bfloat16)

    # Mean-pool matrix P: [Bp, Np]; padded nodes / graphs contribute zero rows/cols.
    counts = jnp.maximum(jnp.zeros((b_pad,), jnp.float32).at[batch].add(1.0), 1.0)
    pool = jax.nn.one_hot(batch, b_pad, dtype=jnp.float32).T          # [Bp, n]
    pool = _pad2(pool, b_pad, n_pad) / counts[:, None]                # [Bp, Np]

    def fold_conv_bn(conv, bn, cin_pad):
        scale = bn["gamma"] / jnp.sqrt(bn["var"] + 1e-5)              # [H]
        shift = bn["beta"] - bn["mean"] * scale                       # [H]
        w_rel = conv["w_rel"] * scale[None, :]                        # [Cin, H]
        w_root = conv["w_root"] * scale[None, :]                      # [Cin, H]
        t = (conv["b_rel"] * scale + shift)[None, :]                  # [1, H]
        w_stacked = jnp.concatenate([_pad2(w_rel, cin_pad, h_pad),
                                     _pad2(w_root, cin_pad, h_pad)], axis=0)
        return w_stacked.astype(jnp.bfloat16), _pad2(t, 1, h_pad).astype(jnp.float32)

    w1, t1 = fold_conv_bn(params["conv1"], params["bn1"], f_pad)
    w2, t2 = fold_conv_bn(params["conv2"], params["bn2"], h_pad)
    w3, t3 = fold_conv_bn(params["conv3"], params["bn3"], h_pad)

    wl1 = _pad2(params["lin1"]["w"], h_pad, m_pad).astype(jnp.float32)
    bl1 = _pad2(params["lin1"]["b"][None, :], 1, m_pad).astype(jnp.float32)
    wl2 = _pad2(params["lin2"]["w"], m_pad, o_pad).astype(jnp.float32)
    bl2 = _pad2(params["lin2"]["b"][None, :], 1, o_pad).astype(jnp.float32)

    ins = [adj, x_p, pool, w1, t1, w2, t2, w3, t3, wl1, bl1, wl2, bl2]

    # Explicit VMEM budget: inputs + a handful of [Np, Hp] f32 intermediates + headroom,
    # capped at 64 MiB so the limit is valid on every generation (v5e/v6e/v7x).
    in_bytes = sum(int(a.size) * a.dtype.itemsize for a in ins)
    inter_bytes = n_pad * (2 * f_pad + 8 * h_pad) * 4
    vmem_limit = int(min(2 * in_bytes + inter_bytes + (8 << 20), 64 << 20))

    vmem = pl.BlockSpec(memory_space=pltpu.MemorySpace.VMEM)
    out = pl.pallas_call(
        gcn_kernel,
        out_shape=jax.ShapeDtypeStruct((b_pad, o_pad), jnp.float32),
        in_specs=[vmem] * len(ins),
        out_specs=vmem,
        compiler_params=pltpu.CompilerParams(vmem_limit_bytes=vmem_limit),
    )(*ins)
    return out[:num_graphs, :1]


def init_params(key, features_channels, hidden_channels):
    """Deterministic synthetic parameters matching model2.__init__ shapes."""
    keys = iter(jax.random.split(key, 40))

    def lin_w(in_c, out_c):
        # stored as [in, out] (transposed torch Linear weight)
        return jax.random.normal(next(keys), (in_c, out_c), jnp.float32) / jnp.sqrt(in_c)

    def vec(c, scl=0.05):
        return scl * jax.random.normal(next(keys), (c,), jnp.float32)

    def conv(in_c, out_c):
        return {"w_rel": lin_w(in_c, out_c), "b_rel": vec(out_c),
                "w_root": lin_w(in_c, out_c)}

    def bn(c):
        return {"gamma": 1.0 + 0.1 * jax.random.normal(next(keys), (c,), jnp.float32),
                "beta": vec(c),
                "mean": vec(c),
                "var": jax.random.uniform(next(keys), (c,), jnp.float32,
                                          minval=0.5, maxval=1.5)}

    return {
        "conv1": conv(features_channels, hidden_channels), "bn1": bn(hidden_channels),
        "conv2": conv(hidden_channels, hidden_channels), "bn2": bn(hidden_channels),
        "conv3": conv(hidden_channels, hidden_channels), "bn3": bn(hidden_channels),
        "lin1": {"w": lin_w(hidden_channels, 16), "b": vec(16)},
        "lin2": {"w": lin_w(16, 1), "b": vec(1)},
    }


def model2_reference(x, edge_index, edge_attr, batch, num_graphs, params):
    """Pure-JAX f32 reference (unpadded) for correctness checking."""
    n = x.shape[0]
    src, dst = edge_index[0], edge_index[1]
    adj = jnp.zeros((n, n), jnp.float32).at[dst, src].add(edge_attr.astype(jnp.float32))

    def layer(h, conv, bn):
        out = (adj @ h) @ conv["w_rel"] + conv["b_rel"] + h @ conv["w_root"]
        scale = bn["gamma"] / jnp.sqrt(bn["var"] + 1e-5)
        out = (out - bn["mean"]) * scale + bn["beta"]
        return jnp.maximum(out, 0.0)

    h = layer(x.astype(jnp.float32), params["conv1"], params["bn1"])
    h = layer(h, params["conv2"], params["bn2"])
    h = layer(h, params["conv3"], params["bn3"])
    counts = jnp.maximum(jnp.zeros((num_graphs,), jnp.float32).at[batch].add(1.0), 1.0)
    pooled = (jax.nn.one_hot(batch, num_graphs, dtype=jnp.float32).T @ h) / counts[:, None]
    z = jnp.maximum(pooled @ params["lin1"]["w"] + params["lin1"]["b"], 0.0)
    return jax.nn.sigmoid(z @ params["lin2"]["w"] + params["lin2"]["b"])


if __name__ == "__main__":
    # Small synthetic graph batch: 2 graphs, 16 nodes total, 8 features, hidden=32.
    FEATURES = 8
    HIDDEN = 32
    N_NODES = 16
    N_EDGES = 48
    NUM_GRAPHS = 2

    key = jax.random.PRNGKey(0)
    k_x, k_ei, k_ea, k_p = jax.random.split(key, 4)

    x = jax.random.normal(k_x, (N_NODES, FEATURES), jnp.float32)
    edge_index = jax.random.randint(k_ei, (2, N_EDGES), 0, N_NODES, jnp.int32)
    edge_attr = jax.random.uniform(k_ea, (N_EDGES,), jnp.float32, minval=0.1, maxval=1.0)
    batch = jnp.concatenate([jnp.zeros((8,), jnp.int32), jnp.ones((8,), jnp.int32)])

    params = init_params(k_p, FEATURES, HIDDEN)

    out = model2_forward(x, edge_index, edge_attr, batch, NUM_GRAPHS, params)
    out = jax.block_until_ready(out)
    assert out.shape == (NUM_GRAPHS, 1)

    ref = model2_reference(x, edge_index, edge_attr, batch, NUM_GRAPHS, params)
    assert jnp.allclose(out, ref, atol=5e-2, rtol=5e-2), (out, ref)
    print("KERNEL_OK")
</pallas_src>

<mosaic_0001>
module attributes {stable_mosaic.version = 11 : i64} {
  func.func @gcn_kernel(%arg0: memref<128x128xbf16, #tpu.memory_space<vmem>>, %arg1: memref<128x128xbf16, #tpu.memory_space<vmem>>, %arg2: memref<8x128xf32, #tpu.memory_space<vmem>>, %arg3: memref<256x128xbf16, #tpu.memory_space<vmem>>, %arg4: memref<1x128xf32, #tpu.memory_space<vmem>>, %arg5: memref<256x128xbf16, #tpu.memory_space<vmem>>, %arg6: memref<1x128xf32, #tpu.memory_space<vmem>>, %arg7: memref<256x128xbf16, #tpu.memory_space<vmem>>, %arg8: memref<1x128xf32, #tpu.memory_space<vmem>>, %arg9: memref<128x128xf32, #tpu.memory_space<vmem>>, %arg10: memref<1x128xf32, #tpu.memory_space<vmem>>, %arg11: memref<128x128xf32, #tpu.memory_space<vmem>>, %arg12: memref<1x128xf32, #tpu.memory_space<vmem>>, %arg13: memref<8x128xf32, #tpu.memory_space<vmem>>) attributes {dimension_semantics = [], scalar_prefetch = 0 : i64, scratch_operands = 0 : i64, tpu.core_type = #tpu.core_type<tc>} {
    %c0 = arith.constant 0 : index
    %c0_0 = arith.constant 0 : index
    %0 = vector.load %arg0[%c0, %c0_0] : memref<128x128xbf16, #tpu.memory_space<vmem>>, vector<128x128xbf16>
    %c0_1 = arith.constant 0 : index
    %c0_2 = arith.constant 0 : index
    %1 = vector.load %arg1[%c0_1, %c0_2] : memref<128x128xbf16, #tpu.memory_space<vmem>>, vector<128x128xbf16>
    %cst = arith.constant dense<0.000000e+00> : vector<128x128xf32>
    %2 = tpu.matmul %0, %1, %cst {dimension_numbers = #tpu.dot_dimension_numbers<[1], [0], [0], [1], [0, 0, 1, 1], [], []>} : vector<128x128xbf16>, vector<128x128xbf16>, vector<128x128xf32> -> vector<128x128xf32>
    %3 = arith.truncf %2 : vector<128x128xf32> to vector<128x128xbf16>
    %4 = tpu.concatenate %3, %1 in 1 : vector<128x128xbf16>, vector<128x128xbf16> -> vector<128x256xbf16>
    %c0_3 = arith.constant 0 : index
    %c0_4 = arith.constant 0 : index
    %5 = vector.load %arg3[%c0_3, %c0_4] : memref<256x128xbf16, #tpu.memory_space<vmem>>, vector<256x128xbf16>
    %cst_5 = arith.constant dense<0.000000e+00> : vector<128x128xf32>
    %6 = tpu.matmul %4, %5, %cst_5 {dimension_numbers = #tpu.dot_dimension_numbers<[1], [0], [0], [1], [0, 0, 1, 1], [], []>} : vector<128x256xbf16>, vector<256x128xbf16>, vector<128x128xf32> -> vector<128x128xf32>
    %c0_6 = arith.constant 0 : index
    %c0_7 = arith.constant 0 : index
    %7 = vector.load %arg4[%c0_6, %c0_7] : memref<1x128xf32, #tpu.memory_space<vmem>>, vector<1x128xf32>
    %8 = vector.broadcast %7 : vector<1x128xf32> to vector<128x128xf32>
    %9 = arith.addf %6, %8 : vector<128x128xf32>
    %cst_8 = arith.constant 0.000000e+00 : f32
    %10 = vector.broadcast %cst_8 : f32 to vector<128x128xf32>
    %11 = arith.maximumf %9, %10 : vector<128x128xf32>
    %12 = arith.truncf %11 : vector<128x128xf32> to vector<128x128xbf16>
    %cst_9 = arith.constant dense<0.000000e+00> : vector<128x128xf32>
    %13 = tpu.matmul %0, %12, %cst_9 {dimension_numbers = #tpu.dot_dimension_numbers<[1], [0], [0], [1], [0, 0, 1, 1], [], []>} : vector<128x128xbf16>, vector<128x128xbf16>, vector<128x128xf32> -> vector<128x128xf32>
    %14 = arith.truncf %13 : vector<128x128xf32> to vector<128x128xbf16>
    %15 = tpu.concatenate %14, %12 in 1 : vector<128x128xbf16>, vector<128x128xbf16> -> vector<128x256xbf16>
    %c0_10 = arith.constant 0 : index
    %c0_11 = arith.constant 0 : index
    %16 = vector.load %arg5[%c0_10, %c0_11] : memref<256x128xbf16, #tpu.memory_space<vmem>>, vector<256x128xbf16>
    %cst_12 = arith.constant dense<0.000000e+00> : vector<128x128xf32>
    %17 = tpu.matmul %15, %16, %cst_12 {dimension_numbers = #tpu.dot_dimension_numbers<[1], [0], [0], [1], [0, 0, 1, 1], [], []>} : vector<128x256xbf16>, vector<256x128xbf16>, vector<128x128xf32> -> vector<128x128xf32>
    %c0_13 = arith.constant 0 : index
    %c0_14 = arith.constant 0 : index
    %18 = vector.load %arg6[%c0_13, %c0_14] : memref<1x128xf32, #tpu.memory_space<vmem>>, vector<1x128xf32>
    %19 = vector.broadcast %18 : vector<1x128xf32> to vector<128x128xf32>
    %20 = arith.addf %17, %19 : vector<128x128xf32>
    %cst_15 = arith.constant 0.000000e+00 : f32
    %21 = vector.broadcast %cst_15 : f32 to vector<128x128xf32>
    %22 = arith.maximumf %20, %21 : vector<128x128xf32>
    %23 = arith.truncf %22 : vector<128x128xf32> to vector<128x128xbf16>
    %cst_16 = arith.constant dense<0.000000e+00> : vector<128x128xf32>
    %24 = tpu.matmul %0, %23, %cst_16 {dimension_numbers = #tpu.dot_dimension_numbers<[1], [0], [0], [1], [0, 0, 1, 1], [], []>} : vector<128x128xbf16>, vector<128x128xbf16>, vector<128x128xf32> -> vector<128x128xf32>
    %25 = arith.truncf %24 : vector<128x128xf32> to vector<128x128xbf16>
    %26 = tpu.concatenate %25, %23 in 1 : vector<128x128xbf16>, vector<128x128xbf16> -> vector<128x256xbf16>
    %c0_17 = arith.constant 0 : index
    %c0_18 = arith.constant 0 : index
    %27 = vector.load %arg7[%c0_17, %c0_18] : memref<256x128xbf16, #tpu.memory_space<vmem>>, vector<256x128xbf16>
    %cst_19 = arith.constant dense<0.000000e+00> : vector<128x128xf32>
    %28 = tpu.matmul %26, %27, %cst_19 {dimension_numbers = #tpu.dot_dimension_numbers<[1], [0], [0], [1], [0, 0, 1, 1], [], []>} : vector<128x256xbf16>, vector<256x128xbf16>, vector<128x128xf32> -> vector<128x128xf32>
    %c0_20 = arith.constant 0 : index
    %c0_21 = arith.constant 0 : index
    %29 = vector.load %arg8[%c0_20, %c0_21] : memref<1x128xf32, #tpu.memory_space<vmem>>, vector<1x128xf32>
    %30 = vector.broadcast %29 : vector<1x128xf32> to vector<128x128xf32>
    %31 = arith.addf %28, %30 : vector<128x128xf32>
    %cst_22 = arith.constant 0.000000e+00 : f32
    %32 = vector.broadcast %cst_22 : f32 to vector<128x128xf32>
    %33 = arith.maximumf %31, %32 : vector<128x128xf32>
    %c0_23 = arith.constant 0 : index
    %c0_24 = arith.constant 0 : index
    %34 = vector.load %arg2[%c0_23, %c0_24] : memref<8x128xf32, #tpu.memory_space<vmem>>, vector<8x128xf32>
    %cst_25 = arith.constant dense<0.000000e+00> : vector<8x128xf32>
    %35 = tpu.matmul %34, %33, %cst_25 {dimension_numbers = #tpu.dot_dimension_numbers<[1], [0], [0], [1], [0, 0, 1, 1], [], []>} : vector<8x128xf32>, vector<128x128xf32>, vector<8x128xf32> -> vector<8x128xf32>
    %c0_26 = arith.constant 0 : index
    %c0_27 = arith.constant 0 : index
    %36 = vector.load %arg9[%c0_26, %c0_27] : memref<128x128xf32, #tpu.memory_space<vmem>>, vector<128x128xf32>
    %cst_28 = arith.constant dense<0.000000e+00> : vector<8x128xf32>
    %37 = tpu.matmul %35, %36, %cst_28 {dimension_numbers = #tpu.dot_dimension_numbers<[1], [0], [0], [1], [0, 0, 1, 1], [], []>} : vector<8x128xf32>, vector<128x128xf32>, vector<8x128xf32> -> vector<8x128xf32>
    %c0_29 = arith.constant 0 : index
    %c0_30 = arith.constant 0 : index
    %38 = vector.load %arg10[%c0_29, %c0_30] : memref<1x128xf32, #tpu.memory_space<vmem>>, vector<1x128xf32>
    %39 = vector.broadcast %38 : vector<1x128xf32> to vector<8x128xf32>
    %40 = arith.addf %37, %39 : vector<8x128xf32>
    %cst_31 = arith.constant 0.000000e+00 : f32
    %41 = vector.broadcast %cst_31 : f32 to vector<8x128xf32>
    %42 = arith.maximumf %40, %41 : vector<8x128xf32>
    %c0_32 = arith.constant 0 : index
    %c0_33 = arith.constant 0 : index
    %43 = vector.load %arg11[%c0_32, %c0_33] : memref<128x128xf32, #tpu.memory_space<vmem>>, vector<128x128xf32>
    %cst_34 = arith.constant dense<0.000000e+00> : vector<8x128xf32>
    %44 = tpu.matmul %42, %43, %cst_34 {dimension_numbers = #tpu.dot_dimension_numbers<[1], [0], [0], [1], [0, 0, 1, 1], [], []>} : vector<8x128xf32>, vector<128x128xf32>, vector<8x128xf32> -> vector<8x128xf32>
    %c0_35 = arith.constant 0 : index
    %c0_36 = arith.constant 0 : index
    %45 = vector.load %arg12[%c0_35, %c0_36] : memref<1x128xf32, #tpu.memory_space<vmem>>, vector<1x128xf32>
    %46 = vector.broadcast %45 : vector<1x128xf32> to vector<8x128xf32>
    %47 = arith.addf %44, %46 : vector<8x128xf32>
    %48 = arith.negf %47 : vector<8x128xf32>
    %49 = math.exp %48 : vector<8x128xf32>
    %cst_37 = arith.constant 1.000000e+00 : f32
    %50 = vector.broadcast %cst_37 : f32 to vector<8x128xf32>
    %51 = arith.addf %50, %49 : vector<8x128xf32>
    %52 = arith.divf %50, %51 : vector<8x128xf32>
    %c0_38 = arith.constant 0 : index
    %c0_39 = arith.constant 0 : index
    %53 = vector.load %arg13[%c0_38, %c0_39] : memref<8x128xf32, #tpu.memory_space<vmem>>, vector<8x128xf32>
    tpu.vector_store %arg13[%c0_38, %c0_39], %52 {strides = array<i32>} : memref<8x128xf32, #tpu.memory_space<vmem>>, vector<8x128xf32>,
    return
  }
}

</mosaic_0001>

<llo_original>
// kernel: tpu_custom_call.1
$region0: #{tpu_custom_call.1}
  #allocation0 [shape = 'u32[]', space=smem, size = 0x4, offset = 0x4, fixed_abs, tag = 'smem constant byte address 0x4 - core index']
  #allocation1 [shape = 'u32[72,128]{1,0:T(1,128)}', space=vmem, size = 0x9000, scoped, tag = 'internal scratch']
  %s0 = inlined_call_operand.hbm [shape: bf16[128,128], index: 0, kind: input, shape index: {}]
  %s1 = inlined_call_operand.hbm [shape: bf16[128,128], index: 1, kind: input, shape index: {}]
  %s2 = inlined_call_operand.hbm [shape: f32[8,128], index: 2, kind: input, shape index: {}]
  %s3 = inlined_call_operand.hbm [shape: bf16[256,128], index: 3, kind: input, shape index: {}]
  %s4 = inlined_call_operand.vmem [shape: f32[1,128], index: 4, kind: input, shape index: {}]
  %s5 = inlined_call_operand.hbm [shape: bf16[256,128], index: 5, kind: input, shape index: {}]
  %s6 = inlined_call_operand.vmem [shape: f32[1,128], index: 6, kind: input, shape index: {}]
  %s7 = inlined_call_operand.hbm [shape: bf16[256,128], index: 7, kind: input, shape index: {}]
  %s8 = inlined_call_operand.vmem [shape: f32[1,128], index: 8, kind: input, shape index: {}]
  %s9 = inlined_call_operand.hbm [shape: f32[128,128], index: 9, kind: input, shape index: {}]
  %s10 = inlined_call_operand.vmem [shape: f32[1,128], index: 10, kind: input, shape index: {}]
  %s11 = inlined_call_operand.hbm [shape: f32[128,128], index: 11, kind: input, shape index: {}]
  %s12 = inlined_call_operand.vmem [shape: f32[1,128], index: 12, kind: input, shape index: {}]
  %s13 = inlined_call_operand.hbm [shape: f32[8,128], index: 13, kind: output, shape index: {}]
  %s14 = sld [smem:[#allocation0]]
  $region94: #{tpu_custom_call.1} parent=0
    _
  %s16 = ssub.s32 1, %s14
  %s17 = scalar_select 0, %s16, %s14
  $region1: #{tpu_custom_call.1} parent=0
    #allocation2 [shape = 'u8[32768]{0}', space=vmem, size = 0x8000, scoped, tag = 'input window, operand 0, single buffered']
    #allocation3 [shape = 's32[1]{0}', space=sflag, size = 0x4, scoped, tag = 'scoped memory for tpu_custom_call.1']
    #allocation4 [shape = 's32[1]{0}', space=sflag, size = 0x4, scoped, tag = 'scoped memory for tpu_custom_call.1']
    #allocation5 [shape = 'u8[32768]{0}', space=vmem, size = 0x8000, scoped, tag = 'input window, operand 1, single buffered']
    #allocation6 [shape = 's32[1]{0}', space=sflag, size = 0x4, scoped, tag = 'scoped memory for tpu_custom_call.1']
    #allocation7 [shape = 'u8[4096]{0}', space=vmem, size = 0x1000, scoped, tag = 'input window, operand 2, single buffered']
    #allocation8 [shape = 'u8[65536]{0}', space=vmem, size = 0x10000, scoped, tag = 'input window, operand 3, single buffered']
    #allocation9 [shape = 's32[1]{0}', space=sflag, size = 0x4, scoped, tag = 'scoped memory for tpu_custom_call.1']
    #allocation10 [shape = 'u8[65536]{0}', space=vmem, size = 0x10000, scoped, tag = 'input window, operand 5, single buffered']
    #allocation11 [shape = 'u8[65536]{0}', space=vmem, size = 0x10000, scoped, tag = 'input window, operand 7, single buffered']
    #allocation12 [shape = 's32[1]{0}', space=sflag, size = 0x4, scoped, tag = 'scoped memory for tpu_custom_call.1']
    #allocation13 [shape = 'u8[65536]{0}', space=vmem, size = 0x10000, scoped, tag = 'input window, operand 9, single buffered']
    #allocation14 [shape = 'u8[65536]{0}', space=vmem, size = 0x10000, scoped, tag = 'input window, operand 11, single buffered']
    #allocation15 [shape = 's32[1]{0}', space=sflag, size = 0x4, scoped, tag = 'scoped memory for tpu_custom_call.1']
    #allocation16 [shape = 'u8[4096]{0}', space=vmem, size = 0x1000, scoped, tag = 'output window, operand 0, single buffered']
    %18 = vsyncpa [#allocation3], 0
    %19 = vsyncpa [#allocation6], 0
    %20 = vsyncpa [#allocation9], 0
    %21 = vsyncpa [#allocation12], 0
    %22 = vsyncpa [#allocation15], 0
    %23 = vsyncpa [#allocation4], 0
    // Predicated region
    $region2: #{tpu_custom_call.1} parent=1 // pred_check
      _
    $region3: #{tpu_custom_call.1} parent=1 // pred_check_branch
      %25 = sbr.rel (0) target = $region5
    $region4: #{tpu_custom_call.1} parent=1 // pred_region
      %27 = vsyncadd [#allocation3], 0
      %s28 = sshll.u32 %s0, 4
      %s29 = int_to_ptr.hbm [resolvable:$true] %s28
      %s30 = sshll.u32 [#allocation2], 4
      %s31 = int_to_ptr.vmem [resolvable:$true] %s30
      %36 = dma.hbm_to_vmem [thread:$0]  %s29, 1024, %s31, [#allocation3], 64, 64, 4
    $region5: #{tpu_custom_call.1} parent=1 // pred_fallthru
      _
    // Predicated region
    $region6: #{tpu_custom_call.1} parent=1 // pred_check
      _
    $region7: #{tpu_custom_call.1} parent=1 // pred_check_branch
      %38 = sbr.rel (0) target = $region9
    $region8: #{tpu_custom_call.1} parent=1 // pred_region
      %40 = vsyncadd [#allocation6], 0
      %s41 = sshll.u32 %s1, 4
      %s42 = int_to_ptr.hbm [resolvable:$true] %s41
      %s43 = sshll.u32 [#allocation5], 4
      %s44 = int_to_ptr.vmem [resolvable:$true] %s43
      %49 = dma.hbm_to_vmem [thread:$0]  %s42, 1024, %s44, [#allocation6], 64, 64, 4
    $region9: #{tpu_custom_call.1} parent=1 // pred_fallthru
      _
    // Predicated region
    $region10: #{tpu_custom_call.1} parent=1 // pred_check
      _
    $region11: #{tpu_custom_call.1} parent=1 // pred_check_branch
      %51 = sbr.rel (0) target = $region13
    $region12: #{tpu_custom_call.1} parent=1 // pred_region
      %53 = vsyncadd [#allocation6], 0
      %s55 = sshll.u32 %s2, 4
      %s56 = int_to_ptr.hbm [resolvable:$true] %s55
      %s57 = sshll.u32 [#allocation7], 4
      %s58 = int_to_ptr.vmem [resolvable:$true] %s57
      %60 = dma.hbm_to_vmem [thread:$0]  %s56, 128, %s58, [#allocation6]
    $region13: #{tpu_custom_call.1} parent=1 // pred_fallthru
      _
    // Predicated region
    $region14: #{tpu_custom_call.1} parent=1 // pred_check
      _
    $region15: #{tpu_custom_call.1} parent=1 // pred_check_branch
      %62 = sbr.rel (0) target = $region17
    $region16: #{tpu_custom_call.1} parent=1 // pred_region
      %64 = vsyncadd [#allocation9], 0
      %s65 = sshll.u32 %s3, 4
      %s66 = int_to_ptr.hbm [resolvable:$true] %s65
      %s67 = sshll.u32 [#allocation8], 4
      %s68 = int_to_ptr.vmem [resolvable:$true] %s67
      %73 = dma.hbm_to_vmem [thread:$0]  %s66, 2048, %s68, [#allocation9], 64, 64, 4
    $region17: #{tpu_custom_call.1} parent=1 // pred_fallthru
      _
    // Predicated region
    $region18: #{tpu_custom_call.1} parent=1 // pred_check
      _
    $region19: #{tpu_custom_call.1} parent=1 // pred_check_branch
      %75 = sbr.rel (0) target = $region21
    $region20: #{tpu_custom_call.1} parent=1 // pred_region
      _
    $region21: #{tpu_custom_call.1} parent=1 // pred_fallthru
      _
    // Predicated region
    $region22: #{tpu_custom_call.1} parent=1 // pred_check
      _
    $region23: #{tpu_custom_call.1} parent=1 // pred_check_branch
      %77 = sbr.rel (0) target = $region25
    $region24: #{tpu_custom_call.1} parent=1 // pred_region
      %79 = vsyncadd [#allocation9], 0
      %s80 = sshll.u32 %s5, 4
      %s81 = int_to_ptr.hbm [resolvable:$true] %s80
      %s82 = sshll.u32 [#allocation10], 4
      %s83 = int_to_ptr.vmem [resolvable:$true] %s82
      %88 = dma.hbm_to_vmem [thread:$0]  %s81, 2048, %s83, [#allocation9], 64, 64, 4
    $region25: #{tpu_custom_call.1} parent=1 // pred_fallthru
      _
    // Predicated region
    $region26: #{tpu_custom_call.1} parent=1 // pred_check
      _
    $region27: #{tpu_custom_call.1} parent=1 // pred_check_branch
      %90 = sbr.rel (0) target = $region29
    $region28: #{tpu_custom_call.1} parent=1 // pred_region
      _
    $region29: #{tpu_custom_call.1} parent=1 // pred_fallthru
      _
    // Predicated region
    $region30: #{tpu_custom_call.1} parent=1 // pred_check
      _
    $region31: #{tpu_custom_call.1} parent=1 // pred_check_branch
      %92 = sbr.rel (0) target = $region33
    $region32: #{tpu_custom_call.1} parent=1 // pred_region
      %94 = vsyncadd [#allocation12], 0
      %s95 = sshll.u32 %s7, 4
      %s96 = int_to_ptr.hbm [resolvable:$true] %s95
      %s97 = sshll.u32 [#allocation11], 4
      %s98 = int_to_ptr.vmem [resolvable:$true] %s97
      %103 = dma.hbm_to_vmem [thread:$0]  %s96, 2048, %s98, [#allocation12], 64, 64, 4
    $region33: #{tpu_custom_call.1} parent=1 // pred_fallthru
      _
    // Predicated region
    $region34: #{tpu_custom_call.1} parent=1 // pred_check
      _
    $region35: #{tpu_custom_call.1} parent=1 // pred_check_branch
      %105 = sbr.rel (0) target = $region37
    $region36: #{tpu_custom_call.1} parent=1 // pred_region
      _
    $region37: #{tpu_custom_call.1} parent=1 // pred_fallthru
      _
    // Predicated region
    $region38: #{tpu_custom_call.1} parent=1 // pred_check
      _
    $region39: #{tpu_custom_call.1} parent=1 // pred_check_branch
      %107 = sbr.rel (0) target = $region41
    $region40: #{tpu_custom_call.1} parent=1 // pred_region
      %109 = vsyncadd [#allocation12], 0
      %s110 = sshll.u32 %s9, 4
      %s111 = int_to_ptr.hbm [resolvable:$true] %s110
      %s112 = sshll.u32 [#allocation13], 4
      %s113 = int_to_ptr.vmem [resolvable:$true] %s112
      %118 = dma.hbm_to_vmem [thread:$0]  %s111, 2048, %s113, [#allocation12], 128, 128, 8
    $region41: #{tpu_custom_call.1} parent=1 // pred_fallthru
      _
    // Predicated region
    $region42: #{tpu_custom_call.1} parent=1 // pred_check
      _
    $region43: #{tpu_custom_call.1} parent=1 // pred_check_branch
      %120 = sbr.rel (0) target = $region45
    $region44: #{tpu_custom_call.1} parent=1 // pred_region
      _
    $region45: #{tpu_custom_call.1} parent=1 // pred_fallthru
      _
    // Predicated region
    $region46: #{tpu_custom_call.1} parent=1 // pred_check
      _
    $region47: #{tpu_custom_call.1} parent=1 // pred_check_branch
      %122 = sbr.rel (0) target = $region49
    $region48: #{tpu_custom_call.1} parent=1 // pred_region
      %124 = vsyncadd [#allocation15], 0
      %s125 = sshll.u32 %s11, 4
      %s126 = int_to_ptr.hbm [resolvable:$true] %s125
      %s127 = sshll.u32 [#allocation14], 4
      %s128 = int_to_ptr.vmem [resolvable:$true] %s127
      %133 = dma.hbm_to_vmem [thread:$0]  %s126, 2048, %s128, [#allocation15], 128, 128, 8
    $region49: #{tpu_custom_call.1} parent=1 // pred_fallthru
      _
    // Predicated region
    $region50: #{tpu_custom_call.1} parent=1 // pred_check
      _
    $region51: #{tpu_custom_call.1} parent=1 // pred_check_branch
      %135 = sbr.rel (0) target = $region53
    $region52: #{tpu_custom_call.1} parent=1 // pred_region
      _
    $region53: #{tpu_custom_call.1} parent=1 // pred_fallthru
      _
    // Predicated region
    $region54: #{tpu_custom_call.1} parent=1 // pred_check
      _
    $region55: #{tpu_custom_call.1} parent=1 // pred_check_branch
      %137 = sbr.rel (0) target = $region57
    $region56: #{tpu_custom_call.1} parent=1 // pred_region
      %139 = dma.done [#allocation3], 1024
    $region57: #{tpu_custom_call.1} parent=1 // pred_fallthru
      _
    // Predicated region
    $region58: #{tpu_custom_call.1} parent=1 // pred_check
      _
    $region59: #{tpu_custom_call.1} parent=1 // pred_check_branch
      %141 = sbr.rel (0) target = $region61
    $region60: #{tpu_custom_call.1} parent=1 // pred_region
      %143 = dma.done [#allocation6], 1024
    $region61: #{tpu_custom_call.1} parent=1 // pred_fallthru
      _
    // Predicated region
    $region62: #{tpu_custom_call.1} parent=1 // pred_check
      _
    $region63: #{tpu_custom_call.1} parent=1 // pred_check_branch
      %145 = sbr.rel (0) target = $region65
    $region64: #{tpu_custom_call.1} parent=1 // pred_region
      %147 = dma.done [#allocation6], 128
    $region65: #{tpu_custom_call.1} parent=1 // pred_fallthru
      _
    // Predicated region
    $region66: #{tpu_custom_call.1} parent=1 // pred_check
      _
    $region67: #{tpu_custom_call.1} parent=1 // pred_check_branch
      %149 = sbr.rel (0) target = $region69
    $region68: #{tpu_custom_call.1} parent=1 // pred_region
      %151 = dma.done [#allocation9], 2048
    $region69: #{tpu_custom_call.1} parent=1 // pred_fallthru
      _
    // Predicated region
    $region70: #{tpu_custom_call.1} parent=1 // pred_check
      _
    $region71: #{tpu_custom_call.1} parent=1 // pred_check_branch
      %153 = sbr.rel (0) target = $region73
    $region72: #{tpu_custom_call.1} parent=1 // pred_region
      %155 = dma.done [#allocation9], 2048
    $region73: #{tpu_custom_call.1} parent=1 // pred_fallthru
      _
    // Predicated region
    $region74: #{tpu_custom_call.1} parent=1 // pred_check
      _
    $region75: #{tpu_custom_call.1} parent=1 // pred_check_branch
      %157 = sbr.rel (0) target = $region77
    $region76: #{tpu_custom_call.1} parent=1 // pred_region
      %159 = dma.done [#allocation12], 2048
    $region77: #{tpu_custom_call.1} parent=1 // pred_fallthru
      _
    // Predicated region
    $region78: #{tpu_custom_call.1} parent=1 // pred_check
      _
    $region79: #{tpu_custom_call.1} parent=1 // pred_check_branch
      %161 = sbr.rel (0) target = $region81
    $region80: #{tpu_custom_call.1} parent=1 // pred_region
      %163 = dma.done [#allocation12], 2048
    $region81: #{tpu_custom_call.1} parent=1 // pred_fallthru
      _
    // Predicated region
    $region82: #{tpu_custom_call.1} parent=1 // pred_check
      _
    $region83: #{tpu_custom_call.1} parent=1 // pred_check_branch
      %165 = sbr.rel (0) target = $region85
    $region84: #{tpu_custom_call.1} parent=1 // pred_region
      %167 = dma.done [#allocation15], 2048
    $region85: #{tpu_custom_call.1} parent=1 // pred_fallthru
      _
    %v168 = vld [vmem:[#allocation2] sm:$0xf]
    %v169 = vld [vmem:[#allocation2 + $0x4] sm:$0xf]
    %v170 = vld [vmem:[#allocation2 + $0x8] sm:$0xf]
    %v171 = vld [vmem:[#allocation2 + $0xc] sm:$0xf]
    %v172 = vld [vmem:[#allocation2 + $0x10] sm:$0xf]
    %v173 = vld [vmem:[#allocation2 + $0x14] sm:$0xf]
    %v174 = vld [vmem:[#allocation2 + $0x18] sm:$0xf]
    %v175 = vld [vmem:[#allocation2 + $0x1c] sm:$0xf]
    %v176 = vld [vmem:[#allocation2 + $0x20] sm:$0xf]
    %v177 = vld [vmem:[#allocation2 + $0x24] sm:$0xf]
    %v178 = vld [vmem:[#allocation2 + $0x28] sm:$0xf]
    %v179 = vld [vmem:[#allocation2 + $0x2c] sm:$0xf]
    %v180 = vld [vmem:[#allocation2 + $0x30] sm:$0xf]
    %v181 = vld [vmem:[#allocation2 + $0x34] sm:$0xf]
    %v182 = vld [vmem:[#allocation2 + $0x38] sm:$0xf]
    %v183 = vld [vmem:[#allocation2 + $0x3c] sm:$0xf]
    %v184 = vld [vmem:[#allocation5] sm:$0xf]
    %v185 = vld [vmem:[#allocation5 + $0x4] sm:$0xf]
    %v186 = vld [vmem:[#allocation5 + $0x8] sm:$0xf]
    %v187 = vld [vmem:[#allocation5 + $0xc] sm:$0xf]
    %v188 = vld [vmem:[#allocation5 + $0x10] sm:$0xf]
    %v189 = vld [vmem:[#allocation5 + $0x14] sm:$0xf]
    %v190 = vld [vmem:[#allocation5 + $0x18] sm:$0xf]
    %v191 = vld [vmem:[#allocation5 + $0x1c] sm:$0xf]
    %v192 = vld [vmem:[#allocation5 + $0x20] sm:$0xf]
    %v193 = vld [vmem:[#allocation5 + $0x24] sm:$0xf]
    %v194 = vld [vmem:[#allocation5 + $0x28] sm:$0xf]
    %v195 = vld [vmem:[#allocation5 + $0x2c] sm:$0xf]
    %v196 = vld [vmem:[#allocation5 + $0x30] sm:$0xf]
    %v197 = vld [vmem:[#allocation5 + $0x34] sm:$0xf]
    %v198 = vld [vmem:[#allocation5 + $0x38] sm:$0xf]
    %v199 = vld [vmem:[#allocation5 + $0x3c] sm:$0xf]
    %v216 = vunpack.c.l.b16 %v168
    %v217 = vunpack.c.l.b16 %v169
    %v218 = vunpack.c.l.b16 %v170
    %v219 = vunpack.c.l.b16 %v171
    %v220 = vunpack.c.l.b16 %v172
    %v221 = vunpack.c.l.b16 %v173
    %v222 = vunpack.c.l.b16 %v174
    %v223 = vunpack.c.l.b16 %v175
    %v224 = vunpack.c.l.b16 %v176
    %v225 = vunpack.c.l.b16 %v177
    %v226 = vunpack.c.l.b16 %v178
    %v227 = vunpack.c.l.b16 %v179
    %v228 = vunpack.c.l.b16 %v180
    %v229 = vunpack.c.l.b16 %v181
    %v230 = vunpack.c.l.b16 %v182
    %v231 = vunpack.c.l.b16 %v183
    %v232 = vpack.c.b16 %v217, %v216
    %v233 = vpack.c.b16 %v219, %v218
    %v234 = vpack.c.b16 %v221, %v220
    %v235 = vpack.c.b16 %v223, %v222
    %v236 = vpack.c.b16 %v225, %v224
    %v237 = vpack.c.b16 %v227, %v226
    %v238 = vpack.c.b16 %v229, %v228
    %v239 = vpack.c.b16 %v231, %v230
    %v264 = vunpack.c.l.b16 %v184
    %v265 = vunpack.c.l.b16 %v185
    %v266 = vunpack.c.l.b16 %v186
    %v267 = vunpack.c.l.b16 %v187
    %v268 = vunpack.c.l.b16 %v188
    %v269 = vunpack.c.l.b16 %v189
    %v270 = vunpack.c.l.b16 %v190
    %v271 = vunpack.c.l.b16 %v191
    %v272 = vunpack.c.l.b16 %v192
    %v273 = vunpack.c.l.b16 %v193
    %v274 = vunpack.c.l.b16 %v194
    %v275 = vunpack.c.l.b16 %v195
    %v276 = vunpack.c.l.b16 %v196
    %v277 = vunpack.c.l.b16 %v197
    %v278 = vunpack.c.l.b16 %v198
    %v279 = vunpack.c.l.b16 %v199
    %v280 = vpack.c.b16 %v265, %v264
    %v281 = vpack.c.b16 %v267, %v266
    %v282 = vpack.c.b16 %v269, %v268
    %v283 = vpack.c.b16 %v271, %v270
    %v284 = vpack.c.b16 %v273, %v272
    %v285 = vpack.c.b16 %v275, %v274
    %v286 = vpack.c.b16 %v277, %v276
    %v287 = vpack.c.b16 %v279, %v278
    %296 = vmatpush.bf16.msra.mxu0 %v287
    %297 = vmatpush.bf16.msra.mxu0 %v286
    %298 = vmatpush.bf16.msra.mxu0 %v285
    %299 = vmatpush.bf16.msra.mxu0 %v284
    %300 = vmatpush.bf16.msra.mxu0 %v283
    %301 = vmatpush.bf16.msra.mxu0 %v282
    %302 = vmatpush.bf16.msra.mxu0 %v281
    %303 = vmatpush.bf16.msra.mxu0 %v280
    %304 = vmatmul.bf16.gmra.mxu0 %v232
    %v305 = vpop.f32.mrf.mxu0
    %v306 = vadd.f32 0.0, %v305
    %v307 = vpop.f32.mrf.mxu0
    %v308 = vadd.f32 0.0, %v307
    %309 = vmatmul.bf16.gmra.mxu0 %v233
    %v310 = vpop.f32.mrf.mxu0
    %v311 = vadd.f32 0.0, %v310
    %v312 = vpop.f32.mrf.mxu0
    %v313 = vadd.f32 0.0, %v312
    %314 = vmatmul.bf16.gmra.mxu0 %v234
    %v315 = vpop.f32.mrf.mxu0
    %v316 = vadd.f32 0.0, %v315
    %v317 = vpop.f32.mrf.mxu0
    %v318 = vadd.f32 0.0, %v317
    %319 = vmatmul.bf16.gmra.mxu0 %v235
    %v320 = vpop.f32.mrf.mxu0
    %v321 = vadd.f32 0.0, %v320
    %v322 = vpop.f32.mrf.mxu0
    %v323 = vadd.f32 0.0, %v322
    %324 = vmatmul.bf16.gmra.mxu0 %v236
    %v325 = vpop.f32.mrf.mxu0
    %v326 = vadd.f32 0.0, %v325
    %v327 = vpop.f32.mrf.mxu0
    %v328 = vadd.f32 0.0, %v327
    %329 = vmatmul.bf16.gmra.mxu0 %v237
    %v330 = vpop.f32.mrf.mxu0
    %v331 = vadd.f32 0.0, %v330
    %v332 = vpop.f32.mrf.mxu0
    %v333 = vadd.f32 0.0, %v332
    %334 = vmatmul.bf16.gmra.mxu0 %v238
    %v335 = vpop.f32.mrf.mxu0
    %v336 = vadd.f32 0.0, %v335
    %v337 = vpop.f32.mrf.mxu0
    %v338 = vadd.f32 0.0, %v337
    %339 = vmatmul.bf16.gmra.mxu0 %v239
    %v340 = vpop.f32.mrf.mxu0
    %v341 = vadd.f32 0.0, %v340
    %v342 = vpop.f32.mrf.mxu0
    %v343 = vadd.f32 0.0, %v342
    %344 = vdwg.mxu0
    %v345 = vpack.c.bf16 %v306, %v306
    %v346 = vpack.c.bf16 %v308, %v308
    %v347 = vpack.c.bf16 %v311, %v311
    %v348 = vpack.c.bf16 %v313, %v313
    %v349 = vpack.c.bf16 %v316, %v316
    %v350 = vpack.c.bf16 %v318, %v318
    %v351 = vpack.c.bf16 %v321, %v321
    %v352 = vpack.c.bf16 %v323, %v323
    %v353 = vpack.c.bf16 %v326, %v326
    %v354 = vpack.c.bf16 %v328, %v328
    %v355 = vpack.c.bf16 %v331, %v331
    %v356 = vpack.c.bf16 %v333, %v333
    %v357 = vpack.c.bf16 %v336, %v336
    %v358 = vpack.c.bf16 %v338, %v338
    %v359 = vpack.c.bf16 %v341, %v341
    %v360 = vpack.c.bf16 %v343, %v343
    %v377 = vunpack.c.l.b16 %v345
    %v378 = vunpack.c.l.b16 %v346
    %v379 = vunpack.c.l.b16 %v347
    %v380 = vunpack.c.l.b16 %v348
    %v381 = vunpack.c.l.b16 %v349
    %v382 = vunpack.c.l.b16 %v350
    %v383 = vunpack.c.l.b16 %v351
    %v384 = vunpack.c.l.b16 %v352
    %v385 = vunpack.c.l.b16 %v353
    %v386 = vunpack.c.l.b16 %v354
    %v387 = vunpack.c.l.b16 %v355
    %v388 = vunpack.c.l.b16 %v356
    %v389 = vunpack.c.l.b16 %v357
    %v390 = vunpack.c.l.b16 %v358
    %v391 = vunpack.c.l.b16 %v359
    %v392 = vunpack.c.l.b16 %v360
    %v393 = vpack.c.b16 %v378, %v377
    %v394 = vpack.c.b16 %v380, %v379
    %v395 = vpack.c.b16 %v382, %v381
    %v396 = vpack.c.b16 %v384, %v383
    %v397 = vpack.c.b16 %v386, %v385
    %v398 = vpack.c.b16 %v388, %v387
    %v399 = vpack.c.b16 %v390, %v389
    %v400 = vpack.c.b16 %v392, %v391
    %v409 = vld [vmem:[#allocation8] sm:$0xf]
    %v410 = vld [vmem:[#allocation8 + $0x4] sm:$0xf]
    %v411 = vld [vmem:[#allocation8 + $0x8] sm:$0xf]
    %v412 = vld [vmem:[#allocation8 + $0xc] sm:$0xf]
    %v413 = vld [vmem:[#allocation8 + $0x10] sm:$0xf]
    %v414 = vld [vmem:[#allocation8 + $0x14] sm:$0xf]
    %v415 = vld [vmem:[#allocation8 + $0x18] sm:$0xf]
    %v416 = vld [vmem:[#allocation8 + $0x1c] sm:$0xf]
    %v417 = vld [vmem:[#allocation8 + $0x20] sm:$0xf]
    %v418 = vld [vmem:[#allocation8 + $0x24] sm:$0xf]
    %v419 = vld [vmem:[#allocation8 + $0x28] sm:$0xf]
    %v420 = vld [vmem:[#allocation8 + $0x2c] sm:$0xf]
    %v421 = vld [vmem:[#allocation8 + $0x30] sm:$0xf]
    %v422 = vld [vmem:[#allocation8 + $0x34] sm:$0xf]
    %v423 = vld [vmem:[#allocation8 + $0x38] sm:$0xf]
    %v424 = vld [vmem:[#allocation8 + $0x3c] sm:$0xf]
    %v425 = vld [vmem:[#allocation8 + $0x40] sm:$0xf]
    %v426 = vld [vmem:[#allocation8 + $0x44] sm:$0xf]
    %v427 = vld [vmem:[#allocation8 + $0x48] sm:$0xf]
    %v428 = vld [vmem:[#allocation8 + $0x4c] sm:$0xf]
    %v429 = vld [vmem:[#allocation8 + $0x50] sm:$0xf]
    %v430 = vld [vmem:[#allocation8 + $0x54] sm:$0xf]
    %v431 = vld [vmem:[#allocation8 + $0x58] sm:$0xf]
    %v432 = vld [vmem:[#allocation8 + $0x5c] sm:$0xf]
    %v433 = vld [vmem:[#allocation8 + $0x60] sm:$0xf]
    %v434 = vld [vmem:[#allocation8 + $0x64] sm:$0xf]
    %v435 = vld [vmem:[#allocation8 + $0x68] sm:$0xf]
    %v436 = vld [vmem:[#allocation8 + $0x6c] sm:$0xf]
    %v437 = vld [vmem:[#allocation8 + $0x70] sm:$0xf]
    %v438 = vld [vmem:[#allocation8 + $0x74] sm:$0xf]
    %v439 = vld [vmem:[#allocation8 + $0x78] sm:$0xf]
    %v440 = vld [vmem:[#allocation8 + $0x7c] sm:$0xf]
    %v441 = vld [vmem:[%s4] sm:$0x1]
    %v443 = vperm.slane %v441, 0
    %v477 = vunpack.c.l.b16 %v409
    %v478 = vunpack.c.l.b16 %v410
    %v479 = vunpack.c.l.b16 %v411
    %v480 = vunpack.c.l.b16 %v412
    %v481 = vunpack.c.l.b16 %v413
    %v482 = vunpack.c.l.b16 %v414
    %v483 = vunpack.c.l.b16 %v415
    %v484 = vunpack.c.l.b16 %v416
    %v485 = vunpack.c.l.b16 %v417
    %v486 = vunpack.c.l.b16 %v418
    %v487 = vunpack.c.l.b16 %v419
    %v488 = vunpack.c.l.b16 %v420
    %v489 = vunpack.c.l.b16 %v421
    %v490 = vunpack.c.l.b16 %v422
    %v491 = vunpack.c.l.b16 %v423
    %v492 = vunpack.c.l.b16 %v424
    %v493 = vunpack.c.l.b16 %v425
    %v494 = vunpack.c.l.b16 %v426
    %v495 = vunpack.c.l.b16 %v427
    %v496 = vunpack.c.l.b16 %v428
    %v497 = vunpack.c.l.b16 %v429
    %v498 = vunpack.c.l.b16 %v430
    %v499 = vunpack.c.l.b16 %v431
    %v500 = vunpack.c.l.b16 %v432
    %v501 = vunpack.c.l.b16 %v433
    %v502 = vunpack.c.l.b16 %v434
    %v503 = vunpack.c.l.b16 %v435
    %v504 = vunpack.c.l.b16 %v436
    %v505 = vunpack.c.l.b16 %v437
    %v506 = vunpack.c.l.b16 %v438
    %v507 = vunpack.c.l.b16 %v439
    %v508 = vunpack.c.l.b16 %v440
    %v509 = vpack.c.b16 %v478, %v477
    %v510 = vpack.c.b16 %v480, %v479
    %v511 = vpack.c.b16 %v482, %v481
    %v512 = vpack.c.b16 %v484, %v483
    %v513 = vpack.c.b16 %v486, %v485
    %v514 = vpack.c.b16 %v488, %v487
    %v515 = vpack.c.b16 %v490, %v489
    %v516 = vpack.c.b16 %v492, %v491
    %v517 = vpack.c.b16 %v494, %v493
    %v518 = vpack.c.b16 %v496, %v495
    %v519 = vpack.c.b16 %v498, %v497
    %v520 = vpack.c.b16 %v500, %v499
    %v521 = vpack.c.b16 %v502, %v501
    %v522 = vpack.c.b16 %v504, %v503
    %v523 = vpack.c.b16 %v506, %v505
    %v524 = vpack.c.b16 %v508, %v507
    %541 = vmatpush.bf16.msra.mxu0 %v516
    %542 = vmatpush.bf16.msra.mxu0 %v515
    %543 = vmatpush.bf16.msra.mxu0 %v514
    %544 = vmatpush.bf16.msra.mxu0 %v513
    %545 = vmatpush.bf16.msra.mxu0 %v512
    %546 = vmatpush.bf16.msra.mxu0 %v511
    %547 = vmatpush.bf16.msra.mxu0 %v510
    %548 = vmatpush.bf16.msra.mxu0 %v509
    %549 = vmatmul.bf16.gmra.mxu0 %v393
    %v550 = vpop.f32.mrf.mxu0
    %v551 = vadd.f32 %v443, %v550
    %v552 = vpop.f32.mrf.mxu0
    %v553 = vadd.f32 %v443, %v552
    %554 = vmatmul.bf16.gmra.mxu0 %v394
    %v555 = vpop.f32.mrf.mxu0
    %v556 = vadd.f32 %v443, %v555
    %v557 = vpop.f32.mrf.mxu0
    %v558 = vadd.f32 %v443, %v557
    %559 = vmatmul.bf16.gmra.mxu0 %v395
    %v560 = vpop.f32.mrf.mxu0
    %v561 = vadd.f32 %v443, %v560
    %v562 = vpop.f32.mrf.mxu0
    %v563 = vadd.f32 %v443, %v562
    %564 = vmatmul.bf16.gmra.mxu0 %v396
    %v565 = vpop.f32.mrf.mxu0
    %v566 = vadd.f32 %v443, %v565
    %v567 = vpop.f32.mrf.mxu0
    %v568 = vadd.f32 %v443, %v567
    %569 = vmatmul.bf16.gmra.mxu0 %v397
    %v570 = vpop.f32.mrf.mxu0
    %v571 = vadd.f32 %v443, %v570
    %v572 = vpop.f32.mrf.mxu0
    %v573 = vadd.f32 %v443, %v572
    %574 = vmatmul.bf16.gmra.mxu0 %v398
    %v575 = vpop.f32.mrf.mxu0
    %v576 = vadd.f32 %v443, %v575
    %v577 = vpop.f32.mrf.mxu0
    %v578 = vadd.f32 %v443, %v577
    %579 = vmatmul.bf16.gmra.mxu0 %v399
    %v580 = vpop.f32.mrf.mxu0
    %v581 = vadd.f32 %v443, %v580
    %v582 = vpop.f32.mrf.mxu0
    %v583 = vadd.f32 %v443, %v582
    %584 = vmatmul.bf16.gmra.mxu0 %v400
    %v585 = vpop.f32.mrf.mxu0
    %v586 = vadd.f32 %v443, %v585
    %v587 = vpop.f32.mrf.mxu0
    %v588 = vadd.f32 %v443, %v587
    %589 = vdwg.mxu0
    %590 = vmatpush.bf16.msra.mxu0 %v524
    %591 = vmatpush.bf16.msra.mxu0 %v523
    %592 = vmatpush.bf16.msra.mxu0 %v522
    %593 = vmatpush.bf16.msra.mxu0 %v521
    %594 = vmatpush.bf16.msra.mxu0 %v520
    %595 = vmatpush.bf16.msra.mxu0 %v519
    %596 = vmatpush.bf16.msra.mxu0 %v518
    %597 = vmatpush.bf16.msra.mxu0 %v517
    %598 = vmatmul.bf16.gmra.mxu0 %v280
    %v599 = vpop.f32.mrf.mxu0
    %v600 = vadd.f32 %v551, %v599
    %v601 = vpop.f32.mrf.mxu0
    %v602 = vadd.f32 %v553, %v601
    %603 = vmatmul.bf16.gmra.mxu0 %v281
    %v604 = vpop.f32.mrf.mxu0
    %v605 = vadd.f32 %v556, %v604
    %v606 = vpop.f32.mrf.mxu0
    %v607 = vadd.f32 %v558, %v606
    %608 = vmatmul.bf16.gmra.mxu0 %v282
    %v609 = vpop.f32.mrf.mxu0
    %v610 = vadd.f32 %v561, %v609
    %v611 = vpop.f32.mrf.mxu0
    %v612 = vadd.f32 %v563, %v611
    %613 = vmatmul.bf16.gmra.mxu0 %v283
    %v614 = vpop.f32.mrf.mxu0
    %v615 = vadd.f32 %v566, %v614
    %v616 = vpop.f32.mrf.mxu0
    %v617 = vadd.f32 %v568, %v616
    %618 = vmatmul.bf16.gmra.mxu0 %v284
    %v619 = vpop.f32.mrf.mxu0
    %v620 = vadd.f32 %v571, %v619
    %v621 = vpop.f32.mrf.mxu0
    %v622 = vadd.f32 %v573, %v621
    %623 = vmatmul.bf16.gmra.mxu0 %v285
    %v624 = vpop.f32.mrf.mxu0
    %v625 = vadd.f32 %v576, %v624
    %v626 = vpop.f32.mrf.mxu0
    %v627 = vadd.f32 %v578, %v626
    %628 = vmatmul.bf16.gmra.mxu0 %v286
    %v629 = vpop.f32.mrf.mxu0
    %v630 = vadd.f32 %v581, %v629
    %v631 = vpop.f32.mrf.mxu0
    %v632 = vadd.f32 %v583, %v631
    %633 = vmatmul.bf16.gmra.mxu0 %v287
    %v634 = vpop.f32.mrf.mxu0
    %v635 = vadd.f32 %v586, %v634
    %v636 = vpop.f32.mrf.mxu0
    %v637 = vadd.f32 %v588, %v636
    %638 = vdwg.mxu0
    %v639 = vmax.f32 %v600, 0.0
    %v640 = vmax.f32 %v602, 0.0
    %v641 = vmax.f32 %v605, 0.0
    %v642 = vmax.f32 %v607, 0.0
    %v643 = vmax.f32 %v610, 0.0
    %v644 = vmax.f32 %v612, 0.0
    %v645 = vmax.f32 %v615, 0.0
    %v646 = vmax.f32 %v617, 0.0
    %v647 = vmax.f32 %v620, 0.0
    %v648 = vmax.f32 %v622, 0.0
    %v649 = vmax.f32 %v625, 0.0
    %v650 = vmax.f32 %v627, 0.0
    %v651 = vmax.f32 %v630, 0.0
    %v652 = vmax.f32 %v632, 0.0
    %v653 = vmax.f32 %v635, 0.0
    %v654 = vmax.f32 %v637, 0.0
    %v655 = vpack.c.bf16 %v639, %v639
    %v656 = vpack.c.bf16 %v640, %v640
    %v657 = vpack.c.bf16 %v641, %v641
    %v658 = vpack.c.bf16 %v642, %v642
    %v659 = vpack.c.bf16 %v643, %v643
    %v660 = vpack.c.bf16 %v644, %v644
    %v661 = vpack.c.bf16 %v645, %v645
    %v662 = vpack.c.bf16 %v646, %v646
    %v663 = vpack.c.bf16 %v647, %v647
    %v664 = vpack.c.bf16 %v648, %v648
    %v665 = vpack.c.bf16 %v649, %v649
    %v666 = vpack.c.bf16 %v650, %v650
    %v667 = vpack.c.bf16 %v651, %v651
    %v668 = vpack.c.bf16 %v652, %v652
    %v669 = vpack.c.bf16 %v653, %v653
    %v670 = vpack.c.bf16 %v654, %v654
    %v687 = vunpack.c.l.b16 %v655
    %v688 = vunpack.c.l.b16 %v656
    %v689 = vunpack.c.l.b16 %v657
    %v690 = vunpack.c.l.b16 %v658
    %v691 = vunpack.c.l.b16 %v659
    %v692 = vunpack.c.l.b16 %v660
    %v693 = vunpack.c.l.b16 %v661
    %v694 = vunpack.c.l.b16 %v662
    %v695 = vunpack.c.l.b16 %v663
    %v696 = vunpack.c.l.b16 %v664
    %v697 = vunpack.c.l.b16 %v665
    %v698 = vunpack.c.l.b16 %v666
    %v699 = vunpack.c.l.b16 %v667
    %v700 = vunpack.c.l.b16 %v668
    %v701 = vunpack.c.l.b16 %v669
    %v702 = vunpack.c.l.b16 %v670
    %v703 = vpack.c.b16 %v688, %v687
    %v704 = vpack.c.b16 %v690, %v689
    %v705 = vpack.c.b16 %v692, %v691
    %v706 = vpack.c.b16 %v694, %v693
    %v707 = vpack.c.b16 %v696, %v695
    %v708 = vpack.c.b16 %v698, %v697
    %v709 = vpack.c.b16 %v700, %v699
    %v710 = vpack.c.b16 %v702, %v701
    %719 = vmatpush.bf16.msra.mxu0 %v710
    %720 = vmatpush.bf16.msra.mxu0 %v709
    %721 = vmatpush.bf16.msra.mxu0 %v708
    %722 = vmatpush.bf16.msra.mxu0 %v707
    %723 = vmatpush.bf16.msra.mxu0 %v706
    %724 = vmatpush.bf16.msra.mxu0 %v705
    %725 = vmatpush.bf16.msra.mxu0 %v704
    %726 = vmatpush.bf16.msra.mxu0 %v703
    %727 = vmatmul.bf16.gmra.mxu0 %v232
    %v728 = vpop.f32.mrf.mxu0
    %v729 = vadd.f32 0.0, %v728
    %v730 = vpop.f32.mrf.mxu0
    %v731 = vadd.f32 0.0, %v730
    %732 = vmatmul.bf16.gmra.mxu0 %v233
    %v733 = vpop.f32.mrf.mxu0
    %v734 = vadd.f32 0.0, %v733
    %v735 = vpop.f32.mrf.mxu0
    %v736 = vadd.f32 0.0, %v735
    %737 = vmatmul.bf16.gmra.mxu0 %v234
    %v738 = vpop.f32.mrf.mxu0
    %v739 = vadd.f32 0.0, %v738
    %v740 = vpop.f32.mrf.mxu0
    %v741 = vadd.f32 0.0, %v740
    %742 = vmatmul.bf16.gmra.mxu0 %v235
    %v743 = vpop.f32.mrf.mxu0
    %v744 = vadd.f32 0.0, %v743
    %v745 = vpop.f32.mrf.mxu0
    %v746 = vadd.f32 0.0, %v745
    %747 = vmatmul.bf16.gmra.mxu0 %v236
    %v748 = vpop.f32.mrf.mxu0
    %v749 = vadd.f32 0.0, %v748
    %v750 = vpop.f32.mrf.mxu0
    %v751 = vadd.f32 0.0, %v750
    %752 = vmatmul.bf16.gmra.mxu0 %v237
    %v753 = vpop.f32.mrf.mxu0
    %v754 = vadd.f32 0.0, %v753
    %v755 = vpop.f32.mrf.mxu0
    %v756 = vadd.f32 0.0, %v755
    %757 = vmatmul.bf16.gmra.mxu0 %v238
    %v758 = vpop.f32.mrf.mxu0
    %v759 = vadd.f32 0.0, %v758
    %v760 = vpop.f32.mrf.mxu0
    %v761 = vadd.f32 0.0, %v760
    %762 = vmatmul.bf16.gmra.mxu0 %v239
    %v763 = vpop.f32.mrf.mxu0
    %v764 = vadd.f32 0.0, %v763
    %v765 = vpop.f32.mrf.mxu0
    %v766 = vadd.f32 0.0, %v765
    %767 = vdwg.mxu0
    %v768 = vpack.c.bf16 %v729, %v729
    %v769 = vpack.c.bf16 %v731, %v731
    %v770 = vpack.c.bf16 %v734, %v734
    %v771 = vpack.c.bf16 %v736, %v736
    %v772 = vpack.c.bf16 %v739, %v739
    %v773 = vpack.c.bf16 %v741, %v741
    %v774 = vpack.c.bf16 %v744, %v744
    %v775 = vpack.c.bf16 %v746, %v746
    %v776 = vpack.c.bf16 %v749, %v749
    %v777 = vpack.c.bf16 %v751, %v751
    %v778 = vpack.c.bf16 %v754, %v754
    %v779 = vpack.c.bf16 %v756, %v756
    %v780 = vpack.c.bf16 %v759, %v759
    %v781 = vpack.c.bf16 %v761, %v761
    %v782 = vpack.c.bf16 %v764, %v764
    %v783 = vpack.c.bf16 %v766, %v766
    %v800 = vunpack.c.l.b16 %v768
    %v801 = vunpack.c.l.b16 %v769
    %v802 = vunpack.c.l.b16 %v770
    %v803 = vunpack.c.l.b16 %v771
    %v804 = vunpack.c.l.b16 %v772
    %v805 = vunpack.c.l.b16 %v773
    %v806 = vunpack.c.l.b16 %v774
    %v807 = vunpack.c.l.b16 %v775
    %v808 = vunpack.c.l.b16 %v776
    %v809 = vunpack.c.l.b16 %v777
    %v810 = vunpack.c.l.b16 %v778
    %v811 = vunpack.c.l.b16 %v779
    %v812 = vunpack.c.l.b16 %v780
    %v813 = vunpack.c.l.b16 %v781
    %v814 = vunpack.c.l.b16 %v782
    %v815 = vunpack.c.l.b16 %v783
    %v816 = vpack.c.b16 %v801, %v800
    %v817 = vpack.c.b16 %v803, %v802
    %v818 = vpack.c.b16 %v805, %v804
    %v819 = vpack.c.b16 %v807, %v806
    %v820 = vpack.c.b16 %v809, %v808
    %v821 = vpack.c.b16 %v811, %v810
    %v822 = vpack.c.b16 %v813, %v812
    %v823 = vpack.c.b16 %v815, %v814
    %v832 = vld [vmem:[#allocation10] sm:$0xf]
    %v833 = vld [vmem:[#allocation10 + $0x4] sm:$0xf]
    %v834 = vld [vmem:[#allocation10 + $0x8] sm:$0xf]
    %v835 = vld [vmem:[#allocation10 + $0xc] sm:$0xf]
    %v836 = vld [vmem:[#allocation10 + $0x10] sm:$0xf]
    %v837 = vld [vmem:[#allocation10 + $0x14] sm:$0xf]
    %v838 = vld [vmem:[#allocation10 + $0x18] sm:$0xf]
    %v839 = vld [vmem:[#allocation10 + $0x1c] sm:$0xf]
    %v840 = vld [vmem:[#allocation10 + $0x20] sm:$0xf]
    %v841 = vld [vmem:[#allocation10 + $0x24] sm:$0xf]
    %v842 = vld [vmem:[#allocation10 + $0x28] sm:$0xf]
    %v843 = vld [vmem:[#allocation10 + $0x2c] sm:$0xf]
    %v844 = vld [vmem:[#allocation10 + $0x30] sm:$0xf]
    %v845 = vld [vmem:[#allocation10 + $0x34] sm:$0xf]
    %v846 = vld [vmem:[#allocation10 + $0x38] sm:$0xf]
    %v847 = vld [vmem:[#allocation10 + $0x3c] sm:$0xf]
    %v848 = vld [vmem:[#allocation10 + $0x40] sm:$0xf]
    %v849 = vld [vmem:[#allocation10 + $0x44] sm:$0xf]
    %v850 = vld [vmem:[#allocation10 + $0x48] sm:$0xf]
    %v851 = vld [vmem:[#allocation10 + $0x4c] sm:$0xf]
    %v852 = vld [vmem:[#allocation10 + $0x50] sm:$0xf]
    %v853 = vld [vmem:[#allocation10 + $0x54] sm:$0xf]
    %v854 = vld [vmem:[#allocation10 + $0x58] sm:$0xf]
    %v855 = vld [vmem:[#allocation10 + $0x5c] sm:$0xf]
    %v856 = vld [vmem:[#allocation10 + $0x60] sm:$0xf]
    %v857 = vld [vmem:[#allocation10 + $0x64] sm:$0xf]
    %v858 = vld [vmem:[#allocation10 + $0x68] sm:$0xf]
    %v859 = vld [vmem:[#allocation10 + $0x6c] sm:$0xf]
    %v860 = vld [vmem:[#allocation10 + $0x70] sm:$0xf]
    %v861 = vld [vmem:[#allocation10 + $0x74] sm:$0xf]
    %v862 = vld [vmem:[#allocation10 + $0x78] sm:$0xf]
    %v863 = vld [vmem:[#allocation10 + $0x7c] sm:$0xf]
    %v864 = vld [vmem:[%s6] sm:$0x1]
    %v866 = vperm.slane %v864, 0
    %v900 = vunpack.c.l.b16 %v832
    %v901 = vunpack.c.l.b16 %v833
    %v902 = vunpack.c.l.b16 %v834
    %v903 = vunpack.c.l.b16 %v835
    %v904 = vunpack.c.l.b16 %v836
    %v905 = vunpack.c.l.b16 %v837
    %v906 = vunpack.c.l.b16 %v838
    %v907 = vunpack.c.l.b16 %v839
    %v908 = vunpack.c.l.b16 %v840
    %v909 = vunpack.c.l.b16 %v841
    %v910 = vunpack.c.l.b16 %v842
    %v911 = vunpack.c.l.b16 %v843
    %v912 = vunpack.c.l.b16 %v844
    %v913 = vunpack.c.l.b16 %v845
    %v914 = vunpack.c.l.b16 %v846
    %v915 = vunpack.c.l.b16 %v847
    %v916 = vunpack.c.l.b16 %v848
    %v917 = vunpack.c.l.b16 %v849
    %v918 = vunpack.c.l.b16 %v850
    %v919 = vunpack.c.l.b16 %v851
    %v920 = vunpack.c.l.b16 %v852
    %v921 = vunpack.c.l.b16 %v853
    %v922 = vunpack.c.l.b16 %v854
    %v923 = vunpack.c.l.b16 %v855
    %v924 = vunpack.c.l.b16 %v856
    %v925 = vunpack.c.l.b16 %v857
    %v926 = vunpack.c.l.b16 %v858
    %v927 = vunpack.c.l.b16 %v859
    %v928 = vunpack.c.l.b16 %v860
    %v929 = vunpack.c.l.b16 %v861
    %v930 = vunpack.c.l.b16 %v862
    %v931 = vunpack.c.l.b16 %v863
    %v932 = vpack.c.b16 %v901, %v900
    %v933 = vpack.c.b16 %v903, %v902
    %v934 = vpack.c.b16 %v905, %v904
    %v935 = vpack.c.b16 %v907, %v906
    %v936 = vpack.c.b16 %v909, %v908
    %v937 = vpack.c.b16 %v911, %v910
    %v938 = vpack.c.b16 %v913, %v912
    %v939 = vpack.c.b16 %v915, %v914
    %v940 = vpack.c.b16 %v917, %v916
    %v941 = vpack.c.b16 %v919, %v918
    %v942 = vpack.c.b16 %v921, %v920
    %v943 = vpack.c.b16 %v923, %v922
    %v944 = vpack.c.b16 %v925, %v924
    %v945 = vpack.c.b16 %v927, %v926
    %v946 = vpack.c.b16 %v929, %v928
    %v947 = vpack.c.b16 %v931, %v930
    %964 = vmatpush.bf16.msra.mxu0 %v939
    %965 = vmatpush.bf16.msra.mxu0 %v938
    %966 = vmatpush.bf16.msra.mxu0 %v937
    %967 = vmatpush.bf16.msra.mxu0 %v936
    %968 = vmatpush.bf16.msra.mxu0 %v935
    %969 = vmatpush.bf16.msra.mxu0 %v934
    %970 = vmatpush.bf16.msra.mxu0 %v933
    %971 = vmatpush.bf16.msra.mxu0 %v932
    %972 = vmatmul.bf16.gmra.mxu0 %v816
    %v973 = vpop.f32.mrf.mxu0
    %v974 = vadd.f32 %v866, %v973
    %v975 = vpop.f32.mrf.mxu0
    %v976 = vadd.f32 %v866, %v975
    %977 = vmatmul.bf16.gmra.mxu0 %v817
    %v978 = vpop.f32.mrf.mxu0
    %v979 = vadd.f32 %v866, %v978
    %v980 = vpop.f32.mrf.mxu0
    %v981 = vadd.f32 %v866, %v980
    %982 = vmatmul.bf16.gmra.mxu0 %v818
    %v983 = vpop.f32.mrf.mxu0
    %v984 = vadd.f32 %v866, %v983
    %v985 = vpop.f32.mrf.mxu0
    %v986 = vadd.f32 %v866, %v985
    %987 = vmatmul.bf16.gmra.mxu0 %v819
    %v988 = vpop.f32.mrf.mxu0
    %v989 = vadd.f32 %v866, %v988
    %v990 = vpop.f32.mrf.mxu0
    %v991 = vadd.f32 %v866, %v990
    %992 = vmatmul.bf16.gmra.mxu0 %v820
    %v993 = vpop.f32.mrf.mxu0
    %v994 = vadd.f32 %v866, %v993
    %v995 = vpop.f32.mrf.mxu0
    %v996 = vadd.f32 %v866, %v995
    %997 = vmatmul.bf16.gmra.mxu0 %v821
    %v998 = vpop.f32.mrf.mxu0
    %v999 = vadd.f32 %v866, %v998
    %v1000 = vpop.f32.mrf.mxu0
    %v1001 = vadd.f32 %v866, %v1000
    %1002 = vmatmul.bf16.gmra.mxu0 %v822
    %v1003 = vpop.f32.mrf.mxu0
    %v1004 = vadd.f32 %v866, %v1003
    %v1005 = vpop.f32.mrf.mxu0
    %v1006 = vadd.f32 %v866, %v1005
    %1007 = vmatmul.bf16.gmra.mxu0 %v823
    %v1008 = vpop.f32.mrf.mxu0
    %v1009 = vadd.f32 %v866, %v1008
    %v1010 = vpop.f32.mrf.mxu0
    %v1011 = vadd.f32 %v866, %v1010
    %1012 = vdwg.mxu0
    %1013 = vmatpush.bf16.msra.mxu0 %v947
    %1014 = vmatpush.bf16.msra.mxu0 %v946
    %1015 = vmatpush.bf16.msra.mxu0 %v945
    %1016 = vmatpush.bf16.msra.mxu0 %v944
    %1017 = vmatpush.bf16.msra.mxu0 %v943
    %1018 = vmatpush.bf16.msra.mxu0 %v942
    %1019 = vmatpush.bf16.msra.mxu0 %v941
    %1020 = vmatpush.bf16.msra.mxu0 %v940
    %1021 = vmatmul.bf16.gmra.mxu0 %v703
    %v1022 = vpop.f32.mrf.mxu0
    %v1023 = vadd.f32 %v974, %v1022
    %v1024 = vpop.f32.mrf.mxu0
    %v1025 = vadd.f32 %v976, %v1024
    %1026 = vmatmul.bf16.gmra.mxu0 %v704
    %v1027 = vpop.f32.mrf.mxu0
    %v1028 = vadd.f32 %v979, %v1027
    %v1029 = vpop.f32.mrf.mxu0
    %v1030 = vadd.f32 %v981, %v1029
    %1031 = vmatmul.bf16.gmra.mxu0 %v705
    %v1032 = vpop.f32.mrf.mxu0
    %v1033 = vadd.f32 %v984, %v1032
    %v1034 = vpop.f32.mrf.mxu0
    %v1035 = vadd.f32 %v986, %v1034
    %1036 = vmatmul.bf16.gmra.mxu0 %v706
    %v1037 = vpop.f32.mrf.mxu0
    %v1038 = vadd.f32 %v989, %v1037
    %v1039 = vpop.f32.mrf.mxu0
    %v1040 = vadd.f32 %v991, %v1039
    %1041 = vmatmul.bf16.gmra.mxu0 %v707
    %v1042 = vpop.f32.mrf.mxu0
    %v1043 = vadd.f32 %v994, %v1042
    %v1044 = vpop.f32.mrf.mxu0
    %v1045 = vadd.f32 %v996, %v1044
    %1046 = vmatmul.bf16.gmra.mxu0 %v708
    %v1047 = vpop.f32.mrf.mxu0
    %v1048 = vadd.f32 %v999, %v1047
    %v1049 = vpop.f32.mrf.mxu0
    %v1050 = vadd.f32 %v1001, %v1049
    %1051 = vmatmul.bf16.gmra.mxu0 %v709
    %v1052 = vpop.f32.mrf.mxu0
    %v1053 = vadd.f32 %v1004, %v1052
    %v1054 = vpop.f32.mrf.mxu0
    %v1055 = vadd.f32 %v1006, %v1054
    %1056 = vmatmul.bf16.gmra.mxu0 %v710
    %v1057 = vpop.f32.mrf.mxu0
    %v1058 = vadd.f32 %v1009, %v1057
    %v1059 = vpop.f32.mrf.mxu0
    %v1060 = vadd.f32 %v1011, %v1059
    %1061 = vdwg.mxu0
    %v1062 = vmax.f32 %v1023, 0.0
    %v1063 = vmax.f32 %v1025, 0.0
    %v1064 = vmax.f32 %v1028, 0.0
    %v1065 = vmax.f32 %v1030, 0.0
    %v1066 = vmax.f32 %v1033, 0.0
    %v1067 = vmax.f32 %v1035, 0.0
    %v1068 = vmax.f32 %v1038, 0.0
    %v1069 = vmax.f32 %v1040, 0.0
    %v1070 = vmax.f32 %v1043, 0.0
    %v1071 = vmax.f32 %v1045, 0.0
    %v1072 = vmax.f32 %v1048, 0.0
    %v1073 = vmax.f32 %v1050, 0.0
    %v1074 = vmax.f32 %v1053, 0.0
    %v1075 = vmax.f32 %v1055, 0.0
    %v1076 = vmax.f32 %v1058, 0.0
    %v1077 = vmax.f32 %v1060, 0.0
    %v1078 = vpack.c.bf16 %v1062, %v1062
    %v1079 = vpack.c.bf16 %v1063, %v1063
    %v1080 = vpack.c.bf16 %v1064, %v1064
    %v1081 = vpack.c.bf16 %v1065, %v1065
    %v1082 = vpack.c.bf16 %v1066, %v1066
    %v1083 = vpack.c.bf16 %v1067, %v1067
    %v1084 = vpack.c.bf16 %v1068, %v1068
    %v1085 = vpack.c.bf16 %v1069, %v1069
    %v1086 = vpack.c.bf16 %v1070, %v1070
    %v1087 = vpack.c.bf16 %v1071, %v1071
    %v1088 = vpack.c.bf16 %v1072, %v1072
    %v1089 = vpack.c.bf16 %v1073, %v1073
    %v1090 = vpack.c.bf16 %v1074, %v1074
    %v1091 = vpack.c.bf16 %v1075, %v1075
    %v1092 = vpack.c.bf16 %v1076, %v1076
    %v1093 = vpack.c.bf16 %v1077, %v1077
    %v1110 = vunpack.c.l.b16 %v1078
    %v1111 = vunpack.c.l.b16 %v1079
    %v1112 = vunpack.c.l.b16 %v1080
    %v1113 = vunpack.c.l.b16 %v1081
    %v1114 = vunpack.c.l.b16 %v1082
    %v1115 = vunpack.c.l.b16 %v1083
    %v1116 = vunpack.c.l.b16 %v1084
    %v1117 = vunpack.c.l.b16 %v1085
    %v1118 = vunpack.c.l.b16 %v1086
    %v1119 = vunpack.c.l.b16 %v1087
    %v1120 = vunpack.c.l.b16 %v1088
    %v1121 = vunpack.c.l.b16 %v1089
    %v1122 = vunpack.c.l.b16 %v1090
    %v1123 = vunpack.c.l.b16 %v1091
    %v1124 = vunpack.c.l.b16 %v1092
    %v1125 = vunpack.c.l.b16 %v1093
    %v1126 = vpack.c.b16 %v1111, %v1110
    %v1127 = vpack.c.b16 %v1113, %v1112
    %v1128 = vpack.c.b16 %v1115, %v1114
    %v1129 = vpack.c.b16 %v1117, %v1116
    %v1130 = vpack.c.b16 %v1119, %v1118
    %v1131 = vpack.c.b16 %v1121, %v1120
    %v1132 = vpack.c.b16 %v1123, %v1122
    %v1133 = vpack.c.b16 %v1125, %v1124
    %1142 = vmatpush.bf16.msra.mxu0 %v1133
    %1143 = vmatpush.bf16.msra.mxu0 %v1132
    %1144 = vmatpush.bf16.msra.mxu0 %v1131
    %1145 = vmatpush.bf16.msra.mxu0 %v1130
    %1146 = vmatpush.bf16.msra.mxu0 %v1129
    %1147 = vmatpush.bf16.msra.mxu0 %v1128
    %1148 = vmatpush.bf16.msra.mxu0 %v1127
    %1149 = vmatpush.bf16.msra.mxu0 %v1126
    %1150 = vmatmul.bf16.gmra.mxu0 %v232
    %v1151 = vpop.f32.mrf.mxu0
    %v1152 = vadd.f32 0.0, %v1151
    %v1153 = vpop.f32.mrf.mxu0
    %v1154 = vadd.f32 0.0, %v1153
    %1155 = vmatmul.bf16.gmra.mxu0 %v233
    %v1156 = vpop.f32.mrf.mxu0
    %v1157 = vadd.f32 0.0, %v1156
    %v1158 = vpop.f32.mrf.mxu0
    %v1159 = vadd.f32 0.0, %v1158
    %1160 = vmatmul.bf16.gmra.mxu0 %v234
    %v1161 = vpop.f32.mrf.mxu0
    %v1162 = vadd.f32 0.0, %v1161
    %v1163 = vpop.f32.mrf.mxu0
    %v1164 = vadd.f32 0.0, %v1163
    %1165 = vmatmul.bf16.gmra.mxu0 %v235
    %v1166 = vpop.f32.mrf.mxu0
    %v1167 = vadd.f32 0.0, %v1166
    %v1168 = vpop.f32.mrf.mxu0
    %v1169 = vadd.f32 0.0, %v1168
    %1170 = vmatmul.bf16.gmra.mxu0 %v236
    %v1171 = vpop.f32.mrf.mxu0
    %v1172 = vadd.f32 0.0, %v1171
    %v1173 = vpop.f32.mrf.mxu0
    %v1174 = vadd.f32 0.0, %v1173
    %1175 = vmatmul.bf16.gmra.mxu0 %v237
    %v1176 = vpop.f32.mrf.mxu0
    %v1177 = vadd.f32 0.0, %v1176
    %v1178 = vpop.f32.mrf.mxu0
    %v1179 = vadd.f32 0.0, %v1178
    %1180 = vmatmul.bf16.gmra.mxu0 %v238
    %v1181 = vpop.f32.mrf.mxu0
    %v1182 = vadd.f32 0.0, %v1181
    %v1183 = vpop.f32.mrf.mxu0
    %v1184 = vadd.f32 0.0, %v1183
    %1185 = vmatmul.bf16.gmra.mxu0 %v239
    %v1186 = vpop.f32.mrf.mxu0
    %v1187 = vadd.f32 0.0, %v1186
    %v1188 = vpop.f32.mrf.mxu0
    %v1189 = vadd.f32 0.0, %v1188
    %1190 = vdwg.mxu0
    %v1191 = vpack.c.bf16 %v1152, %v1152
    %v1192 = vpack.c.bf16 %v1154, %v1154
    %v1193 = vpack.c.bf16 %v1157, %v1157
    %v1194 = vpack.c.bf16 %v1159, %v1159
    %v1195 = vpack.c.bf16 %v1162, %v1162
    %v1196 = vpack.c.bf16 %v1164, %v1164
    %v1197 = vpack.c.bf16 %v1167, %v1167
    %v1198 = vpack.c.bf16 %v1169, %v1169
    %v1199 = vpack.c.bf16 %v1172, %v1172
    %v1200 = vpack.c.bf16 %v1174, %v1174
    %v1201 = vpack.c.bf16 %v1177, %v1177
    %v1202 = vpack.c.bf16 %v1179, %v1179
    %v1203 = vpack.c.bf16 %v1182, %v1182
    %v1204 = vpack.c.bf16 %v1184, %v1184
    %v1205 = vpack.c.bf16 %v1187, %v1187
    %v1206 = vpack.c.bf16 %v1189, %v1189
    %v1223 = vunpack.c.l.b16 %v1191
    %v1224 = vunpack.c.l.b16 %v1192
    %v1225 = vunpack.c.l.b16 %v1193
    %v1226 = vunpack.c.l.b16 %v1194
    %v1227 = vunpack.c.l.b16 %v1195
    %v1228 = vunpack.c.l.b16 %v1196
    %v1229 = vunpack.c.l.b16 %v1197
    %v1230 = vunpack.c.l.b16 %v1198
    %v1231 = vunpack.c.l.b16 %v1199
    %v1232 = vunpack.c.l.b16 %v1200
    %v1233 = vunpack.c.l.b16 %v1201
    %v1234 = vunpack.c.l.b16 %v1202
    %v1235 = vunpack.c.l.b16 %v1203
    %v1236 = vunpack.c.l.b16 %v1204
    %v1237 = vunpack.c.l.b16 %v1205
    %v1238 = vunpack.c.l.b16 %v1206
    %v1239 = vpack.c.b16 %v1224, %v1223
    %v1240 = vpack.c.b16 %v1226, %v1225
    %v1241 = vpack.c.b16 %v1228, %v1227
    %v1242 = vpack.c.b16 %v1230, %v1229
    %v1243 = vpack.c.b16 %v1232, %v1231
    %v1244 = vpack.c.b16 %v1234, %v1233
    %v1245 = vpack.c.b16 %v1236, %v1235
    %v1246 = vpack.c.b16 %v1238, %v1237
    %v1255 = vld [vmem:[#allocation11] sm:$0xf]
    %v1256 = vld [vmem:[#allocation11 + $0x4] sm:$0xf]
    %v1257 = vld [vmem:[#allocation11 + $0x8] sm:$0xf]
    %v1258 = vld [vmem:[#allocation11 + $0xc] sm:$0xf]
    %v1259 = vld [vmem:[#allocation11 + $0x10] sm:$0xf]
    %v1260 = vld [vmem:[#allocation11 + $0x14] sm:$0xf]
    %v1261 = vld [vmem:[#allocation11 + $0x18] sm:$0xf]
    %v1262 = vld [vmem:[#allocation11 + $0x1c] sm:$0xf]
    %v1263 = vld [vmem:[#allocation11 + $0x20] sm:$0xf]
    %v1264 = vld [vmem:[#allocation11 + $0x24] sm:$0xf]
    %v1265 = vld [vmem:[#allocation11 + $0x28] sm:$0xf]
    %v1266 = vld [vmem:[#allocation11 + $0x2c] sm:$0xf]
    %v1267 = vld [vmem:[#allocation11 + $0x30] sm:$0xf]
    %v1268 = vld [vmem:[#allocation11 + $0x34] sm:$0xf]
    %v1269 = vld [vmem:[#allocation11 + $0x38] sm:$0xf]
    %v1270 = vld [vmem:[#allocation11 + $0x3c] sm:$0xf]
    %v1271 = vld [vmem:[#allocation11 + $0x40] sm:$0xf]
    %v1272 = vld [vmem:[#allocation11 + $0x44] sm:$0xf]
    %v1273 = vld [vmem:[#allocation11 + $0x48] sm:$0xf]
    %v1274 = vld [vmem:[#allocation11 + $0x4c] sm:$0xf]
    %v1275 = vld [vmem:[#allocation11 + $0x50] sm:$0xf]
    %v1276 = vld [vmem:[#allocation11 + $0x54] sm:$0xf]
    %v1277 = vld [vmem:[#allocation11 + $0x58] sm:$0xf]
    %v1278 = vld [vmem:[#allocation11 + $0x5c] sm:$0xf]
    %v1279 = vld [vmem:[#allocation11 + $0x60] sm:$0xf]
    %v1280 = vld [vmem:[#allocation11 + $0x64] sm:$0xf]
    %v1281 = vld [vmem:[#allocation11 + $0x68] sm:$0xf]
    %v1282 = vld [vmem:[#allocation11 + $0x6c] sm:$0xf]
    %v1283 = vld [vmem:[#allocation11 + $0x70] sm:$0xf]
    %v1284 = vld [vmem:[#allocation11 + $0x74] sm:$0xf]
    %v1285 = vld [vmem:[#allocation11 + $0x78] sm:$0xf]
    %v1286 = vld [vmem:[#allocation11 + $0x7c] sm:$0xf]
    %v1287 = vld [vmem:[%s8] sm:$0x1]
    %v1289 = vperm.slane %v1287, 0
    %v1323 = vunpack.c.l.b16 %v1255
    %v1324 = vunpack.c.l.b16 %v1256
    %v1325 = vunpack.c.l.b16 %v1257
    %v1326 = vunpack.c.l.b16 %v1258
    %v1327 = vunpack.c.l.b16 %v1259
    %v1328 = vunpack.c.l.b16 %v1260
    %v1329 = vunpack.c.l.b16 %v1261
    %v1330 = vunpack.c.l.b16 %v1262
    %v1331 = vunpack.c.l.b16 %v1263
    %v1332 = vunpack.c.l.b16 %v1264
    %v1333 = vunpack.c.l.b16 %v1265
    %v1334 = vunpack.c.l.b16 %v1266
    %v1335 = vunpack.c.l.b16 %v1267
    %v1336 = vunpack.c.l.b16 %v1268
    %v1337 = vunpack.c.l.b16 %v1269
    %v1338 = vunpack.c.l.b16 %v1270
    %v1339 = vunpack.c.l.b16 %v1271
    %v1340 = vunpack.c.l.b16 %v1272
    %v1341 = vunpack.c.l.b16 %v1273
    %v1342 = vunpack.c.l.b16 %v1274
    %v1343 = vunpack.c.l.b16 %v1275
    %v1344 = vunpack.c.l.b16 %v1276
    %v1345 = vunpack.c.l.b16 %v1277
    %v1346 = vunpack.c.l.b16 %v1278
    %v1347 = vunpack.c.l.b16 %v1279
    %v1348 = vunpack.c.l.b16 %v1280
    %v1349 = vunpack.c.l.b16 %v1281
    %v1350 = vunpack.c.l.b16 %v1282
    %v1351 = vunpack.c.l.b16 %v1283
    %v1352 = vunpack.c.l.b16 %v1284
    %v1353 = vunpack.c.l.b16 %v1285
    %v1354 = vunpack.c.l.b16 %v1286
    %v1355 = vpack.c.b16 %v1324, %v1323
    %v1356 = vpack.c.b16 %v1326, %v1325
    %v1357 = vpack.c.b16 %v1328, %v1327
    %v1358 = vpack.c.b16 %v1330, %v1329
    %v1359 = vpack.c.b16 %v1332, %v1331
    %v1360 = vpack.c.b16 %v1334, %v1333
    %v1361 = vpack.c.b16 %v1336, %v1335
    %v1362 = vpack.c.b16 %v1338, %v1337
    %v1363 = vpack.c.b16 %v1340, %v1339
    %v1364 = vpack.c.b16 %v1342, %v1341
    %v1365 = vpack.c.b16 %v1344, %v1343
    %v1366 = vpack.c.b16 %v1346, %v1345
    %v1367 = vpack.c.b16 %v1348, %v1347
    %v1368 = vpack.c.b16 %v1350, %v1349
    %v1369 = vpack.c.b16 %v1352, %v1351
    %v1370 = vpack.c.b16 %v1354, %v1353
    %1387 = vmatpush.bf16.msra.mxu0 %v1362
    %1388 = vmatpush.bf16.msra.mxu0 %v1361
    %1389 = vmatpush.bf16.msra.mxu0 %v1360
    %1390 = vmatpush.bf16.msra.mxu0 %v1359
    %1391 = vmatpush.bf16.msra.mxu0 %v1358
    %1392 = vmatpush.bf16.msra.mxu0 %v1357
    %1393 = vmatpush.bf16.msra.mxu0 %v1356
    %1394 = vmatpush.bf16.msra.mxu0 %v1355
    %1395 = vmatmul.bf16.gmra.mxu0 %v1239
    %v1396 = vpop.f32.mrf.mxu0
    %v1397 = vadd.f32 %v1289, %v1396
    %v1398 = vpop.f32.mrf.mxu0
    %v1399 = vadd.f32 %v1289, %v1398
    %1400 = vmatmul.bf16.gmra.mxu0 %v1240
    %v1401 = vpop.f32.mrf.mxu0
    %v1402 = vadd.f32 %v1289, %v1401
    %v1403 = vpop.f32.mrf.mxu0
    %v1404 = vadd.f32 %v1289, %v1403
    %1405 = vmatmul.bf16.gmra.mxu0 %v1241
    %v1406 = vpop.f32.mrf.mxu0
    %v1407 = vadd.f32 %v1289, %v1406
    %v1408 = vpop.f32.mrf.mxu0
    %v1409 = vadd.f32 %v1289, %v1408
    %1410 = vmatmul.bf16.gmra.mxu0 %v1242
    %v1411 = vpop.f32.mrf.mxu0
    %v1412 = vadd.f32 %v1289, %v1411
    %v1413 = vpop.f32.mrf.mxu0
    %v1414 = vadd.f32 %v1289, %v1413
    %1415 = vmatmul.bf16.gmra.mxu0 %v1243
    %v1416 = vpop.f32.mrf.mxu0
    %v1417 = vadd.f32 %v1289, %v1416
    %v1418 = vpop.f32.mrf.mxu0
    %v1419 = vadd.f32 %v1289, %v1418
    %1420 = vmatmul.bf16.gmra.mxu0 %v1244
    %v1421 = vpop.f32.mrf.mxu0
    %v1422 = vadd.f32 %v1289, %v1421
    %v1423 = vpop.f32.mrf.mxu0
    %v1424 = vadd.f32 %v1289, %v1423
    %1425 = vmatmul.bf16.gmra.mxu0 %v1245
    %v1426 = vpop.f32.mrf.mxu0
    %v1427 = vadd.f32 %v1289, %v1426
    %v1428 = vpop.f32.mrf.mxu0
    %v1429 = vadd.f32 %v1289, %v1428
    %1430 = vmatmul.bf16.gmra.mxu0 %v1246
    %v1431 = vpop.f32.mrf.mxu0
    %v1432 = vadd.f32 %v1289, %v1431
    %v1433 = vpop.f32.mrf.mxu0
    %v1434 = vadd.f32 %v1289, %v1433
    %1435 = vdwg.mxu0
    %1436 = vmatpush.bf16.msra.mxu0 %v1370
    %1437 = vmatpush.bf16.msra.mxu0 %v1369
    %1438 = vmatpush.bf16.msra.mxu0 %v1368
    %1439 = vmatpush.bf16.msra.mxu0 %v1367
    %1440 = vmatpush.bf16.msra.mxu0 %v1366
    %1441 = vmatpush.bf16.msra.mxu0 %v1365
    %1442 = vmatpush.bf16.msra.mxu0 %v1364
    %1443 = vmatpush.bf16.msra.mxu0 %v1363
    %1444 = vmatmul.bf16.gmra.mxu0 %v1126
    %v1445 = vpop.f32.mrf.mxu0
    %v1446 = vadd.f32 %v1397, %v1445
    %v1447 = vpop.f32.mrf.mxu0
    %v1448 = vadd.f32 %v1399, %v1447
    %1449 = vmatmul.bf16.gmra.mxu0 %v1127
    %v1450 = vpop.f32.mrf.mxu0
    %v1451 = vadd.f32 %v1402, %v1450
    %v1452 = vpop.f32.mrf.mxu0
    %v1453 = vadd.f32 %v1404, %v1452
    %1454 = vmatmul.bf16.gmra.mxu0 %v1128
    %v1455 = vpop.f32.mrf.mxu0
    %v1456 = vadd.f32 %v1407, %v1455
    %v1457 = vpop.f32.mrf.mxu0
    %v1458 = vadd.f32 %v1409, %v1457
    %1459 = vmatmul.bf16.gmra.mxu0 %v1129
    %v1460 = vpop.f32.mrf.mxu0
    %v1461 = vadd.f32 %v1412, %v1460
    %v1462 = vpop.f32.mrf.mxu0
    %v1463 = vadd.f32 %v1414, %v1462
    %1464 = vmatmul.bf16.gmra.mxu0 %v1130
    %v1465 = vpop.f32.mrf.mxu0
    %v1466 = vadd.f32 %v1417, %v1465
    %v1467 = vpop.f32.mrf.mxu0
    %v1468 = vadd.f32 %v1419, %v1467
    %1469 = vmatmul.bf16.gmra.mxu0 %v1131
    %v1470 = vpop.f32.mrf.mxu0
    %v1471 = vadd.f32 %v1422, %v1470
    %v1472 = vpop.f32.mrf.mxu0
    %v1473 = vadd.f32 %v1424, %v1472
    %1474 = vmatmul.bf16.gmra.mxu0 %v1132
    %v1475 = vpop.f32.mrf.mxu0
    %v1476 = vadd.f32 %v1427, %v1475
    %v1477 = vpop.f32.mrf.mxu0
    %v1478 = vadd.f32 %v1429, %v1477
    %1479 = vmatmul.bf16.gmra.mxu0 %v1133
    %v1480 = vpop.f32.mrf.mxu0
    %v1481 = vadd.f32 %v1432, %v1480
    %v1482 = vpop.f32.mrf.mxu0
    %v1483 = vadd.f32 %v1434, %v1482
    %1484 = vdwg.mxu0
    %v1485 = vmax.f32 %v1446, 0.0
    %v1486 = vmax.f32 %v1448, 0.0
    %v1487 = vmax.f32 %v1451, 0.0
    %v1488 = vmax.f32 %v1453, 0.0
    %v1489 = vmax.f32 %v1456, 0.0
    %v1490 = vmax.f32 %v1458, 0.0
    %v1491 = vmax.f32 %v1461, 0.0
    %v1492 = vmax.f32 %v1463, 0.0
    %v1493 = vmax.f32 %v1466, 0.0
    %v1494 = vmax.f32 %v1468, 0.0
    %v1495 = vmax.f32 %v1471, 0.0
    %v1496 = vmax.f32 %v1473, 0.0
    %v1497 = vmax.f32 %v1476, 0.0
    %v1498 = vmax.f32 %v1478, 0.0
    %v1499 = vmax.f32 %v1481, 0.0
    %v1500 = vmax.f32 %v1483, 0.0
    %v1501 = vld [vmem:[#allocation7] sm:$0xff]
    %1502 = vmatpush.msra.mxu0 %v1500
    %1503 = vmatpush.msra.mxu0 %v1499
    %1504 = vmatpush.msra.mxu0 %v1498
    %1505 = vmatpush.msra.mxu0 %v1497
    %1506 = vmatpush.msra.mxu0 %v1496
    %1507 = vmatpush.msra.mxu0 %v1495
    %1508 = vmatpush.msra.mxu0 %v1494
    %1509 = vmatpush.msra.mxu0 %v1493
    %1510 = vmatpush.msra.mxu0 %v1492
    %1511 = vmatpush.msra.mxu0 %v1491
    %1512 = vmatpush.msra.mxu0 %v1490
    %1513 = vmatpush.msra.mxu0 %v1489
    %1514 = vmatpush.msra.mxu0 %v1488
    %1515 = vmatpush.msra.mxu0 %v1487
    %1516 = vmatpush.msra.mxu0 %v1486
    %1517 = vmatpush.msra.mxu0 %v1485
    %1518 = vmatmul.f32.gmra.mxu0 %v1501
    %v1519 = vpop.f32.mrf.mxu0
    %v1520 = vadd.f32 0.0, %v1519
    %1521 = vdwg.mxu0
    %v1522 = vld [vmem:[#allocation13] sm:$0xff]
    %v1523 = vld [vmem:[#allocation13 + $0x8] sm:$0xff]
    %v1524 = vld [vmem:[#allocation13 + $0x10] sm:$0xff]
    %v1525 = vld [vmem:[#allocation13 + $0x18] sm:$0xff]
    %v1526 = vld [vmem:[#allocation13 + $0x20] sm:$0xff]
    %v1527 = vld [vmem:[#allocation13 + $0x28] sm:$0xff]
    %v1528 = vld [vmem:[#allocation13 + $0x30] sm:$0xff]
    %v1529 = vld [vmem:[#allocation13 + $0x38] sm:$0xff]
    %v1530 = vld [vmem:[#allocation13 + $0x40] sm:$0xff]
    %v1531 = vld [vmem:[#allocation13 + $0x48] sm:$0xff]
    %v1532 = vld [vmem:[#allocation13 + $0x50] sm:$0xff]
    %v1533 = vld [vmem:[#allocation13 + $0x58] sm:$0xff]
    %v1534 = vld [vmem:[#allocation13 + $0x60] sm:$0xff]
    %v1535 = vld [vmem:[#allocation13 + $0x68] sm:$0xff]
    %v1536 = vld [vmem:[#allocation13 + $0x70] sm:$0xff]
    %v1537 = vld [vmem:[#allocation13 + $0x78] sm:$0xff]
    %v1538 = vld [vmem:[%s10] sm:$0x1]
    %v1540 = vperm.slane %v1538, 0
    %1542 = vmatpush.msra.mxu0 %v1537
    %1543 = vmatpush.msra.mxu0 %v1536
    %1544 = vmatpush.msra.mxu0 %v1535
    %1545 = vmatpush.msra.mxu0 %v1534
    %1546 = vmatpush.msra.mxu0 %v1533
    %1547 = vmatpush.msra.mxu0 %v1532
    %1548 = vmatpush.msra.mxu0 %v1531
    %1549 = vmatpush.msra.mxu0 %v1530
    %1550 = vmatpush.msra.mxu0 %v1529
    %1551 = vmatpush.msra.mxu0 %v1528
    %1552 = vmatpush.msra.mxu0 %v1527
    %1553 = vmatpush.msra.mxu0 %v1526
    %1554 = vmatpush.msra.mxu0 %v1525
    %1555 = vmatpush.msra.mxu0 %v1524
    %1556 = vmatpush.msra.mxu0 %v1523
    %1557 = vmatpush.msra.mxu0 %v1522
    %1558 = vmatmul.f32.gmra.mxu0 %v1520
    %v1559 = vpop.f32.mrf.mxu0
    %v1560 = vadd.f32 %v1540, %v1559
    %1561 = vdwg.mxu0
    %v1562 = vmax.f32 %v1560, 0.0
    %v1563 = vld [vmem:[#allocation14] sm:$0xff]
    %v1564 = vld [vmem:[#allocation14 + $0x8] sm:$0xff]
    %v1565 = vld [vmem:[#allocation14 + $0x10] sm:$0xff]
    %v1566 = vld [vmem:[#allocation14 + $0x18] sm:$0xff]
    %v1567 = vld [vmem:[#allocation14 + $0x20] sm:$0xff]
    %v1568 = vld [vmem:[#allocation14 + $0x28] sm:$0xff]
    %v1569 = vld [vmem:[#allocation14 + $0x30] sm:$0xff]
    %v1570 = vld [vmem:[#allocation14 + $0x38] sm:$0xff]
    %v1571 = vld [vmem:[#allocation14 + $0x40] sm:$0xff]
    %v1572 = vld [vmem:[#allocation14 + $0x48] sm:$0xff]
    %v1573 = vld [vmem:[#allocation14 + $0x50] sm:$0xff]
    %v1574 = vld [vmem:[#allocation14 + $0x58] sm:$0xff]
    %v1575 = vld [vmem:[#allocation14 + $0x60] sm:$0xff]
    %v1576 = vld [vmem:[#allocation14 + $0x68] sm:$0xff]
    %v1577 = vld [vmem:[#allocation14 + $0x70] sm:$0xff]
    %v1578 = vld [vmem:[#allocation14 + $0x78] sm:$0xff]
    %v1579 = vld [vmem:[%s12] sm:$0x1]
    %v1581 = vperm.slane %v1579, 0
    %1583 = vmatpush.msra.mxu0 %v1578
    %1584 = vmatpush.msra.mxu0 %v1577
    %1585 = vmatpush.msra.mxu0 %v1576
    %1586 = vmatpush.msra.mxu0 %v1575
    %1587 = vmatpush.msra.mxu0 %v1574
    %1588 = vmatpush.msra.mxu0 %v1573
    %1589 = vmatpush.msra.mxu0 %v1572
    %1590 = vmatpush.msra.mxu0 %v1571
    %1591 = vmatpush.msra.mxu0 %v1570
    %1592 = vmatpush.msra.mxu0 %v1569
    %1593 = vmatpush.msra.mxu0 %v1568
    %1594 = vmatpush.msra.mxu0 %v1567
    %1595 = vmatpush.msra.mxu0 %v1566
    %1596 = vmatpush.msra.mxu0 %v1565
    %1597 = vmatpush.msra.mxu0 %v1564
    %1598 = vmatpush.msra.mxu0 %v1563
    %1599 = vmatmul.f32.gmra.mxu0 %v1562
    %v1600 = vpop.f32.mrf.mxu0
    %v1601 = vadd.f32 %v1581, %v1600
    %1602 = vdwg.mxu0
    %v1603 = vxor.u32 %v1601, 2147483648
    %v1604 = vmul.f32 %v1603, 1.442695
    %v1605 = vpow.pop %v1604
    %v1606 = vadd.f32 %v1605, 1.0
    %v1607 = vrcp.pop %v1606
    %v1608 = vmul.f32 %v1606, %v1607
    %v1609 = vsub.f32 1.0, %v1608
    %v1610 = vmul.f32 %v1607, %v1609
    %v1611 = vadd.f32 %v1607, %v1610
    %vm1612 = vweird.f32 %v1606
    %vm1613 = vweird.f32 %v1607
    %vm1614 = vmor %vm1612, %vm1613
    %v1615 = vsel %vm1614, %v1607, %v1611
    %v1616 = vand.u32 2147483647, %v1606
    %vm1617 = vcmp.eq.f32.partialorder %v1616, 8.507059e+37
    %v1618 = vand.u32 %v1606, 2147483648
    %v1619 = vor.u32 1.1754944e-38, %v1618
    %v1620 = vsel %vm1617, %v1619, %v1615
    %v1621 = vmul.f32 1.0, %v1620
    %1622 = vst [vmem:[#allocation16] sm:$0xff] %v1621
    // Predicated region
    $region86: #{tpu_custom_call.1} parent=1 // pred_check
      _
    $region87: #{tpu_custom_call.1} parent=1 // pred_check_branch
      %1624 = sbr.rel (0) target = $region89
    $region88: #{tpu_custom_call.1} parent=1 // pred_region
      %1626 = vsyncadd [#allocation4], 0
      %s1628 = sshll.u32 [#allocation16], 4
      %s1629 = int_to_ptr.vmem [resolvable:$true] %s1628
      %s1630 = sshll.u32 %s13, 4
      %s1631 = int_to_ptr.hbm [resolvable:$true] %s1630
      %1633 = dma.vmem_to_hbm [thread:$0]  %s1629, 128, %s1631, [#allocation4]
    $region89: #{tpu_custom_call.1} parent=1 // pred_fallthru
      _
    // Predicated region
    $region90: #{tpu_custom_call.1} parent=1 // pred_check
      _
    $region91: #{tpu_custom_call.1} parent=1 // pred_check_branch
      %1635 = sbr.rel (0) target = $region93
    $region92: #{tpu_custom_call.1} parent=1 // pred_region
      %1637 = dma.done [#allocation4], 128
    $region93: #{tpu_custom_call.1} parent=1 // pred_fallthru
      _
    %1638 = vsyncpa [#allocation3], 1
    %1639 = vsyncpa [#allocation6], 1
    %1640 = vsyncpa [#allocation9], 1
    %1641 = vsyncpa [#allocation12], 1
    %1642 = vsyncpa [#allocation15], 1
    %1643 = vsyncpa [#allocation4], 1

</llo_original>
